<compile_context>
chip_gen: v5e
topology: v5e:2x2
jax: 0.10.0
libtpu: 0.0.40
codegen_flags: <defaults>
</compile_context>

<pallas_src>
import functools

import jax
import jax.numpy as jnp
from jax.experimental import pallas as pl
from jax.experimental.pallas import tpu as pltpu


# ----------------------------------------------------------------------------
# Fused Pallas kernel: conv(im2col)+ReLU -> enc+ReLU -> mlp1+ReLU -> mlp2
# ----------------------------------------------------------------------------
def _fused_forward_kernel(xT_ref, wcT_ref, bconv_ref, encw_hbm, encb_ref,
                          w1_ref, b1_ref, w2_ref, b2_ref,
                          o_ref,
                          lhs_scratch, encw_vmem, dma_sem,
                          *, B, C, Pp, F):
    """Single gridless invocation; all operands are whole-array refs.

    xT_ref      : (K, B*Pp)   im2col'ed input (VMEM), K = KH*KW*Cin, lane dim = B*Pp
    wcT_ref     : (C, K)      conv weights^T (VMEM)
    bconv_ref   : (C, 1)      conv bias (VMEM)
    encw_hbm    : (C*Pp, F)   encoder weights, c-major/p-minor rows, padded p rows are 0 (HBM)
    encb_ref    : (1, F)
    w1_ref      : (F, H1)     mlp hidden
    b1_ref      : (1, H1)
    w2_ref      : (H1, 128)   mlp out, zero-padded to 128 lanes
    b2_ref      : (1, 128)
    o_ref       : (B, 128)    lane-dense output (sliced to out_dim outside)
    lhs_scratch : (B, C*Pp)   VMEM scratch for the conv->encoder relayout
    encw_vmem   : (C*Pp, F)   VMEM landing buffer for the manual enc_w DMA
    dma_sem     : DMA semaphore
    """
    # (1) Kick off the ~256 KiB encoder-weight DMA first so it overlaps with the conv
    #     matmul + relayout instead of sitting serially in the input-DMA prologue.
    enc_cp = pltpu.make_async_copy(encw_hbm, encw_vmem, dma_sem)
    enc_cp.start()

    # (2) head conv: ONE MXU matmul, M=C, K=KH*KW*Cin, N=B*Pp (lane-dense), + bias + ReLU.
    conv = jnp.dot(wcT_ref[...], xT_ref[...], preferred_element_type=jnp.float32)
    conv = jnp.maximum(conv + bconv_ref[...], 0.0)              # (C, B*Pp)

    # (3) Relayout (C, B*Pp) -> (B, C*Pp), c-major / p-minor per row (matching enc_w rows),
    #     as B*C static lane-slice stores.  Replaces the old per-(c,b) matmul decomposition.
    for b in range(B):
        for c in range(C):
            lhs_scratch[b:b + 1, c * Pp:(c + 1) * Pp] = conv[c:c + 1, b * Pp:(b + 1) * Pp]

    # (4) head encoder linear: ONE MXU matmul (B, C*Pp) @ (C*Pp, F) — replaces 16 serialized
    #     M=1 matmuls.  Padded p rows of enc_w are exactly zero, so the relu(conv_bias)
    #     values sitting in padded conv lanes contribute nothing.
    enc_cp.wait()
    h = jnp.dot(lhs_scratch[...], encw_vmem[...], preferred_element_type=jnp.float32)
    h = jnp.maximum(h + encb_ref[...], 0.0)                     # (B, F)

    # (5) body MLP: Linear + ReLU + Linear;  foot: Identity.
    h = jnp.maximum(
        jnp.dot(h, w1_ref[...], preferred_element_type=jnp.float32) + b1_ref[...], 0.0)
    o_ref[...] = jnp.dot(h, w2_ref[...], preferred_element_type=jnp.float32) + b2_ref[...]


# ----------------------------------------------------------------------------
# One-time parameter re-layout (hoisted out of the per-call forward)
# ----------------------------------------------------------------------------
def prepare_params(params, x_shape):
    B, Cin, H, W = x_shape
    KH, KW, _, Cout = params["conv_w"].shape
    OH, OW = H - KH + 1, W - KW + 1
    P = OH * OW
    Pp = ((P + 127) // 128) * 128            # per-batch spatial dim padded to a lane multiple
    K = KH * KW * Cin
    F = params["enc_w"].shape[1]
    H1 = params["mlp1_w"].shape[1]
    out_dim = params["mlp2_w"].shape[1]
    N2 = 128                                 # lane-dense final output width

    meta = dict(B=B, Cin=Cin, H=H, W=W, KH=KH, KW=KW, Cout=Cout, OH=OH, OW=OW,
                P=P, Pp=Pp, K=K, F=F, H1=H1, out_dim=out_dim, N2=N2)

    # conv weights / bias
    wcT = params["conv_w"].reshape(K, Cout).T                # (Cout, K)
    bconv = params["conv_b"].reshape(Cout, 1)

    # encoder weights: NHWC-flatten rows (p, c) -> channel-major (c, p), pad p, flatten.
    # Padded p rows MUST stay exactly zero (padded conv lanes carry relu(conv_bias) > 0).
    enc_w = params["enc_w"].reshape(P, Cout, F)
    enc_w = jnp.transpose(enc_w, (1, 0, 2))                  # (Cout, P, F)
    enc_w = jnp.pad(enc_w, ((0, 0), (0, Pp - P), (0, 0)))    # (Cout, Pp, F)
    enc_w = enc_w.reshape(Cout * Pp, F)                      # (C*Pp, F)
    enc_b = params["enc_b"].reshape(1, F)

    # MLP weights; pad the final out dim to 128 lanes (zeros) for an unmasked vst.
    w1 = params["mlp1_w"]
    b1 = params["mlp1_b"].reshape(1, -1)
    w2 = jnp.pad(params["mlp2_w"], ((0, 0), (0, N2 - out_dim)))
    b2 = jnp.pad(params["mlp2_b"].reshape(1, -1), ((0, 0), (0, N2 - out_dim)))

    prepped = dict(wcT=wcT, bconv=bconv, enc_w=enc_w, enc_b=enc_b,
                   w1=w1, b1=b1, w2=w2, b2=b2)
    prepped = jax.block_until_ready(prepped)                 # materialize once, not per call
    return prepped, meta


# ----------------------------------------------------------------------------
# Forward factory: per-call jit only does the x-dependent im2col + the fused kernel
# ----------------------------------------------------------------------------
def make_forward(meta):
    B, Cin = meta["B"], meta["Cin"]
    KH, KW, Cout = meta["KH"], meta["KW"], meta["Cout"]
    OH, OW, P, Pp, K = meta["OH"], meta["OW"], meta["P"], meta["Pp"], meta["K"]
    F, out_dim, N2 = meta["F"], meta["out_dim"], meta["N2"]

    kern = functools.partial(_fused_forward_kernel, B=B, C=Cout, Pp=Pp, F=F)
    vmem = pl.BlockSpec(memory_space=pltpu.MemorySpace.VMEM)
    hbm = pl.BlockSpec(memory_space=pl.ANY)

    fused_call = pl.pallas_call(
        kern,
        out_shape=jax.ShapeDtypeStruct((B, N2), jnp.float32),
        in_specs=[vmem, vmem, vmem, hbm, vmem, vmem, vmem, vmem, vmem],
        out_specs=vmem,
        scratch_shapes=[
            pltpu.VMEM((B, Cout * Pp), jnp.float32),   # lhs relayout buffer
            pltpu.VMEM((Cout * Pp, F), jnp.float32),   # enc_w landing buffer (manual DMA)
            pltpu.SemaphoreType.DMA(()),
        ],
        # Gridless: whole working set (~1.2 MiB) fits VMEM on every generation, so there is
        # no per-step pipeline overhead and no weight re-staging.
    )

    @jax.jit
    def forward(x_nchw, prepped):
        # --- im2col, transposed & lane-dense: xT[k, b*Pp + p], k = (i*KW+j)*Cin + cin ---
        x_nhwc = jnp.transpose(x_nchw, (0, 2, 3, 1))
        patches = [x_nhwc[:, i:i + OH, j:j + OW, :] for i in range(KH) for j in range(KW)]
        pat = jnp.stack(patches, axis=0)                     # (KH*KW, B, OH, OW, Cin)
        pat = pat.reshape(KH * KW, B, P, Cin)
        pat = jnp.transpose(pat, (0, 3, 1, 2))               # (KH*KW, Cin, B, P)
        pat = pat.reshape(K, B, P)
        pat = jnp.pad(pat, ((0, 0), (0, 0), (0, Pp - P)))
        xT = pat.reshape(K, B * Pp)                          # (K, B*Pp)

        out_padded = fused_call(
            xT, prepped["wcT"], prepped["bconv"], prepped["enc_w"], prepped["enc_b"],
            prepped["w1"], prepped["b1"], prepped["w2"], prepped["b2"])
        return out_padded[:, :out_dim]

    return forward


# ----------------------------------------------------------------------------
# Reference (plain JAX) for a correctness check
# ----------------------------------------------------------------------------
def reference_forward(x_nchw, params):
    x = jnp.transpose(x_nchw, (0, 2, 3, 1))
    h = jax.lax.conv_general_dilated(
        x, params["conv_w"], window_strides=(1, 1), padding="VALID",
        dimension_numbers=("NHWC", "HWIO", "NHWC"),
    ) + params["conv_b"]
    h = jnp.maximum(h, 0.0)
    h = h.reshape(h.shape[0], -1)
    h = jnp.maximum(h @ params["enc_w"] + params["enc_b"], 0.0)
    h = jnp.maximum(h @ params["mlp1_w"] + params["mlp1_b"], 0.0)
    return h @ params["mlp2_w"] + params["mlp2_b"]


# ----------------------------------------------------------------------------
# Main
# ----------------------------------------------------------------------------
if __name__ == "__main__":
    B, Cin, H, W = 2, 4, 16, 16
    Cout, KH, KW = 8, 3, 3
    OH, OW = H - KH + 1, W - KW + 1
    feats, hidden, out_dim = 32, 32, 1

    key = jax.random.PRNGKey(0)
    ks = jax.random.split(key, 10)

    params = {
        "conv_w": 0.1 * jax.random.normal(ks[0], (KH, KW, Cin, Cout), jnp.float32),
        "conv_b": 0.1 * jax.random.normal(ks[1], (Cout,), jnp.float32),
        "enc_w": 0.05 * jax.random.normal(ks[2], (Cout * OH * OW, feats), jnp.float32),
        "enc_b": 0.05 * jax.random.normal(ks[3], (feats,), jnp.float32),
        "mlp1_w": 0.1 * jax.random.normal(ks[4], (feats, hidden), jnp.float32),
        "mlp1_b": 0.1 * jax.random.normal(ks[5], (hidden,), jnp.float32),
        "mlp2_w": 0.1 * jax.random.normal(ks[6], (hidden, out_dim), jnp.float32),
        "mlp2_b": 0.1 * jax.random.normal(ks[7], (out_dim,), jnp.float32),
    }

    x = jax.random.normal(ks[8], (B, Cin, H, W), jnp.float32)

    prepped, meta = prepare_params(params, x.shape)   # one-time weight re-layout
    composite_net_forward = make_forward(meta)

    out = composite_net_forward(x, prepped)
    out = jax.block_until_ready(out)

    ref = jax.block_until_ready(reference_forward(x, params))
    assert out.shape == (B, out_dim), out.shape
    assert jnp.allclose(out, ref, atol=1e-4, rtol=1e-4), (out, ref)

    print("KERNEL_OK")
</pallas_src>

<mosaic_0001>
module attributes {stable_mosaic.version = 11 : i64} {
  func.func @_fused_forward_kernel(%arg0: memref<36x512xf32, #tpu.memory_space<vmem>>, %arg1: memref<8x36xf32, #tpu.memory_space<vmem>>, %arg2: memref<8x1xf32, #tpu.memory_space<vmem>>, %arg3: memref<2048x32xf32, #tpu.memory_space<any>>, %arg4: memref<1x32xf32, #tpu.memory_space<vmem>>, %arg5: memref<32x32xf32, #tpu.memory_space<vmem>>, %arg6: memref<1x32xf32, #tpu.memory_space<vmem>>, %arg7: memref<32x128xf32, #tpu.memory_space<vmem>>, %arg8: memref<1x128xf32, #tpu.memory_space<vmem>>, %arg9: memref<2x128xf32, #tpu.memory_space<vmem>>, %arg10: memref<2x2048xf32, #tpu.memory_space<vmem>>, %arg11: memref<2048x32xf32, #tpu.memory_space<vmem>>, %arg12: memref<!tpu.dma_semaphore, #tpu.memory_space<semaphore_mem>>) attributes {dimension_semantics = [], scalar_prefetch = 0 : i64, scratch_operands = 3 : i64, tpu.core_type = #tpu.core_type<tc>} {
    tpu.enqueue_dma source(%arg3 : memref<2048x32xf32, #tpu.memory_space<any>>) target(%arg11 : memref<2048x32xf32, #tpu.memory_space<vmem>>) target_semaphore(%arg12 : memref<!tpu.dma_semaphore, #tpu.memory_space<semaphore_mem>>)
    %c0 = arith.constant 0 : index
    %c0_0 = arith.constant 0 : index
    %0 = vector.load %arg1[%c0, %c0_0] : memref<8x36xf32, #tpu.memory_space<vmem>>, vector<8x36xf32>
    %c0_1 = arith.constant 0 : index
    %c0_2 = arith.constant 0 : index
    %1 = vector.load %arg0[%c0_1, %c0_2] : memref<36x512xf32, #tpu.memory_space<vmem>>, vector<36x512xf32>
    %cst = arith.constant dense<0.000000e+00> : vector<8x512xf32>
    %2 = tpu.matmul %0, %1, %cst {dimension_numbers = #tpu.dot_dimension_numbers<[1], [0], [0], [1], [0, 0, 1, 1], [], []>} : vector<8x36xf32>, vector<36x512xf32>, vector<8x512xf32> -> vector<8x512xf32>
    %c0_3 = arith.constant 0 : index
    %c0_4 = arith.constant 0 : index
    %3 = vector.load %arg2[%c0_3, %c0_4] : memref<8x1xf32, #tpu.memory_space<vmem>>, vector<8x1xf32>
    %4 = vector.broadcast %3 : vector<8x1xf32> to vector<8x512xf32>
    %5 = arith.addf %2, %4 : vector<8x512xf32>
    %cst_5 = arith.constant 0.000000e+00 : f32
    %6 = vector.broadcast %cst_5 : f32 to vector<8x512xf32>
    %7 = arith.maximumf %5, %6 : vector<8x512xf32>
    %8 = vector.extract_strided_slice %7 {offsets = [0, 0], sizes = [1, 256], strides = [1, 1]} : vector<8x512xf32> to vector<1x256xf32>
    %c0_6 = arith.constant 0 : index
    %c0_7 = arith.constant 0 : index
    %9 = vector.load %arg10[%c0_6, %c0_7] : memref<2x2048xf32, #tpu.memory_space<vmem>>, vector<1x256xf32>
    tpu.vector_store %arg10[%c0_6, %c0_7], %8 {strides = array<i32>} : memref<2x2048xf32, #tpu.memory_space<vmem>>, vector<1x256xf32>,
    %10 = vector.extract_strided_slice %7 {offsets = [1, 0], sizes = [1, 256], strides = [1, 1]} : vector<8x512xf32> to vector<1x256xf32>
    %c0_8 = arith.constant 0 : index
    %c256 = arith.constant 256 : index
    %11 = vector.load %arg10[%c0_8, %c256] : memref<2x2048xf32, #tpu.memory_space<vmem>>, vector<1x256xf32>
    tpu.vector_store %arg10[%c0_8, %c256], %10 {strides = array<i32>} : memref<2x2048xf32, #tpu.memory_space<vmem>>, vector<1x256xf32>,
    %12 = vector.extract_strided_slice %7 {offsets = [2, 0], sizes = [1, 256], strides = [1, 1]} : vector<8x512xf32> to vector<1x256xf32>
    %c0_9 = arith.constant 0 : index
    %c512 = arith.constant 512 : index
    %13 = vector.load %arg10[%c0_9, %c512] : memref<2x2048xf32, #tpu.memory_space<vmem>>, vector<1x256xf32>
    tpu.vector_store %arg10[%c0_9, %c512], %12 {strides = array<i32>} : memref<2x2048xf32, #tpu.memory_space<vmem>>, vector<1x256xf32>,
    %14 = vector.extract_strided_slice %7 {offsets = [3, 0], sizes = [1, 256], strides = [1, 1]} : vector<8x512xf32> to vector<1x256xf32>
    %c0_10 = arith.constant 0 : index
    %c768 = arith.constant 768 : index
    %15 = vector.load %arg10[%c0_10, %c768] : memref<2x2048xf32, #tpu.memory_space<vmem>>, vector<1x256xf32>
    tpu.vector_store %arg10[%c0_10, %c768], %14 {strides = array<i32>} : memref<2x2048xf32, #tpu.memory_space<vmem>>, vector<1x256xf32>,
    %16 = vector.extract_strided_slice %7 {offsets = [4, 0], sizes = [1, 256], strides = [1, 1]} : vector<8x512xf32> to vector<1x256xf32>
    %c0_11 = arith.constant 0 : index
    %c1024 = arith.constant 1024 : index
    %17 = vector.load %arg10[%c0_11, %c1024] : memref<2x2048xf32, #tpu.memory_space<vmem>>, vector<1x256xf32>
    tpu.vector_store %arg10[%c0_11, %c1024], %16 {strides = array<i32>} : memref<2x2048xf32, #tpu.memory_space<vmem>>, vector<1x256xf32>,
    %18 = vector.extract_strided_slice %7 {offsets = [5, 0], sizes = [1, 256], strides = [1, 1]} : vector<8x512xf32> to vector<1x256xf32>
    %c0_12 = arith.constant 0 : index
    %c1280 = arith.constant 1280 : index
    %19 = vector.load %arg10[%c0_12, %c1280] : memref<2x2048xf32, #tpu.memory_space<vmem>>, vector<1x256xf32>
    tpu.vector_store %arg10[%c0_12, %c1280], %18 {strides = array<i32>} : memref<2x2048xf32, #tpu.memory_space<vmem>>, vector<1x256xf32>,
    %20 = vector.extract_strided_slice %7 {offsets = [6, 0], sizes = [1, 256], strides = [1, 1]} : vector<8x512xf32> to vector<1x256xf32>
    %c0_13 = arith.constant 0 : index
    %c1536 = arith.constant 1536 : index
    %21 = vector.load %arg10[%c0_13, %c1536] : memref<2x2048xf32, #tpu.memory_space<vmem>>, vector<1x256xf32>
    tpu.vector_store %arg10[%c0_13, %c1536], %20 {strides = array<i32>} : memref<2x2048xf32, #tpu.memory_space<vmem>>, vector<1x256xf32>,
    %22 = vector.extract_strided_slice %7 {offsets = [7, 0], sizes = [1, 256], strides = [1, 1]} : vector<8x512xf32> to vector<1x256xf32>
    %c0_14 = arith.constant 0 : index
    %c1792 = arith.constant 1792 : index
    %23 = vector.load %arg10[%c0_14, %c1792] : memref<2x2048xf32, #tpu.memory_space<vmem>>, vector<1x256xf32>
    tpu.vector_store %arg10[%c0_14, %c1792], %22 {strides = array<i32>} : memref<2x2048xf32, #tpu.memory_space<vmem>>, vector<1x256xf32>,
    %24 = vector.extract_strided_slice %7 {offsets = [0, 256], sizes = [1, 256], strides = [1, 1]} : vector<8x512xf32> to vector<1x256xf32>
    %c1 = arith.constant 1 : index
    %c0_15 = arith.constant 0 : index
    %25 = vector.load %arg10[%c1, %c0_15] : memref<2x2048xf32, #tpu.memory_space<vmem>>, vector<1x256xf32>
    tpu.vector_store %arg10[%c1, %c0_15], %24 {strides = array<i32>} : memref<2x2048xf32, #tpu.memory_space<vmem>>, vector<1x256xf32>,
    %26 = vector.extract_strided_slice %7 {offsets = [1, 256], sizes = [1, 256], strides = [1, 1]} : vector<8x512xf32> to vector<1x256xf32>
    %c1_16 = arith.constant 1 : index
    %c256_17 = arith.constant 256 : index
    %27 = vector.load %arg10[%c1_16, %c256_17] : memref<2x2048xf32, #tpu.memory_space<vmem>>, vector<1x256xf32>
    tpu.vector_store %arg10[%c1_16, %c256_17], %26 {strides = array<i32>} : memref<2x2048xf32, #tpu.memory_space<vmem>>, vector<1x256xf32>,
    %28 = vector.extract_strided_slice %7 {offsets = [2, 256], sizes = [1, 256], strides = [1, 1]} : vector<8x512xf32> to vector<1x256xf32>
    %c1_18 = arith.constant 1 : index
    %c512_19 = arith.constant 512 : index
    %29 = vector.load %arg10[%c1_18, %c512_19] : memref<2x2048xf32, #tpu.memory_space<vmem>>, vector<1x256xf32>
    tpu.vector_store %arg10[%c1_18, %c512_19], %28 {strides = array<i32>} : memref<2x2048xf32, #tpu.memory_space<vmem>>, vector<1x256xf32>,
    %30 = vector.extract_strided_slice %7 {offsets = [3, 256], sizes = [1, 256], strides = [1, 1]} : vector<8x512xf32> to vector<1x256xf32>
    %c1_20 = arith.constant 1 : index
    %c768_21 = arith.constant 768 : index
    %31 = vector.load %arg10[%c1_20, %c768_21] : memref<2x2048xf32, #tpu.memory_space<vmem>>, vector<1x256xf32>
    tpu.vector_store %arg10[%c1_20, %c768_21], %30 {strides = array<i32>} : memref<2x2048xf32, #tpu.memory_space<vmem>>, vector<1x256xf32>,
    %32 = vector.extract_strided_slice %7 {offsets = [4, 256], sizes = [1, 256], strides = [1, 1]} : vector<8x512xf32> to vector<1x256xf32>
    %c1_22 = arith.constant 1 : index
    %c1024_23 = arith.constant 1024 : index
    %33 = vector.load %arg10[%c1_22, %c1024_23] : memref<2x2048xf32, #tpu.memory_space<vmem>>, vector<1x256xf32>
    tpu.vector_store %arg10[%c1_22, %c1024_23], %32 {strides = array<i32>} : memref<2x2048xf32, #tpu.memory_space<vmem>>, vector<1x256xf32>,
    %34 = vector.extract_strided_slice %7 {offsets = [5, 256], sizes = [1, 256], strides = [1, 1]} : vector<8x512xf32> to vector<1x256xf32>
    %c1_24 = arith.constant 1 : index
    %c1280_25 = arith.constant 1280 : index
    %35 = vector.load %arg10[%c1_24, %c1280_25] : memref<2x2048xf32, #tpu.memory_space<vmem>>, vector<1x256xf32>
    tpu.vector_store %arg10[%c1_24, %c1280_25], %34 {strides = array<i32>} : memref<2x2048xf32, #tpu.memory_space<vmem>>, vector<1x256xf32>,
    %36 = vector.extract_strided_slice %7 {offsets = [6, 256], sizes = [1, 256], strides = [1, 1]} : vector<8x512xf32> to vector<1x256xf32>
    %c1_26 = arith.constant 1 : index
    %c1536_27 = arith.constant 1536 : index
    %37 = vector.load %arg10[%c1_26, %c1536_27] : memref<2x2048xf32, #tpu.memory_space<vmem>>, vector<1x256xf32>
    tpu.vector_store %arg10[%c1_26, %c1536_27], %36 {strides = array<i32>} : memref<2x2048xf32, #tpu.memory_space<vmem>>, vector<1x256xf32>,
    %38 = vector.extract_strided_slice %7 {offsets = [7, 256], sizes = [1, 256], strides = [1, 1]} : vector<8x512xf32> to vector<1x256xf32>
    %c1_28 = arith.constant 1 : index
    %c1792_29 = arith.constant 1792 : index
    %39 = vector.load %arg10[%c1_28, %c1792_29] : memref<2x2048xf32, #tpu.memory_space<vmem>>, vector<1x256xf32>
    tpu.vector_store %arg10[%c1_28, %c1792_29], %38 {strides = array<i32>} : memref<2x2048xf32, #tpu.memory_space<vmem>>, vector<1x256xf32>,
    tpu.wait_dma2 semaphore(%arg12 : memref<!tpu.dma_semaphore, #tpu.memory_space<semaphore_mem>>) src(%arg3 : memref<2048x32xf32, #tpu.memory_space<any>>) dst(%arg11 : memref<2048x32xf32, #tpu.memory_space<vmem>>)
    %c0_30 = arith.constant 0 : index
    %c0_31 = arith.constant 0 : index
    %40 = vector.load %arg10[%c0_30, %c0_31] : memref<2x2048xf32, #tpu.memory_space<vmem>>, vector<2x2048xf32>
    %c0_32 = arith.constant 0 : index
    %c0_33 = arith.constant 0 : index
    %41 = vector.load %arg11[%c0_32, %c0_33] : memref<2048x32xf32, #tpu.memory_space<vmem>>, vector<2048x32xf32>
    %cst_34 = arith.constant dense<0.000000e+00> : vector<2x32xf32>
    %42 = tpu.matmul %40, %41, %cst_34 {dimension_numbers = #tpu.dot_dimension_numbers<[1], [0], [0], [1], [0, 0, 1, 1], [], []>} : vector<2x2048xf32>, vector<2048x32xf32>, vector<2x32xf32> -> vector<2x32xf32>
    %c0_35 = arith.constant 0 : index
    %c0_36 = arith.constant 0 : index
    %43 = vector.load %arg4[%c0_35, %c0_36] : memref<1x32xf32, #tpu.memory_space<vmem>>, vector<1x32xf32>
    %44 = vector.broadcast %43 : vector<1x32xf32> to vector<2x32xf32>
    %45 = arith.addf %42, %44 : vector<2x32xf32>
    %cst_37 = arith.constant 0.000000e+00 : f32
    %46 = vector.broadcast %cst_37 : f32 to vector<2x32xf32>
    %47 = arith.maximumf %45, %46 : vector<2x32xf32>
    %c0_38 = arith.constant 0 : index
    %c0_39 = arith.constant 0 : index
    %48 = vector.load %arg5[%c0_38, %c0_39] : memref<32x32xf32, #tpu.memory_space<vmem>>, vector<32x32xf32>
    %cst_40 = arith.constant dense<0.000000e+00> : vector<2x32xf32>
    %49 = tpu.matmul %47, %48, %cst_40 {dimension_numbers = #tpu.dot_dimension_numbers<[1], [0], [0], [1], [0, 0, 1, 1], [], []>} : vector<2x32xf32>, vector<32x32xf32>, vector<2x32xf32> -> vector<2x32xf32>
    %c0_41 = arith.constant 0 : index
    %c0_42 = arith.constant 0 : index
    %50 = vector.load %arg6[%c0_41, %c0_42] : memref<1x32xf32, #tpu.memory_space<vmem>>, vector<1x32xf32>
    %51 = vector.broadcast %50 : vector<1x32xf32> to vector<2x32xf32>
    %52 = arith.addf %49, %51 : vector<2x32xf32>
    %cst_43 = arith.constant 0.000000e+00 : f32
    %53 = vector.broadcast %cst_43 : f32 to vector<2x32xf32>
    %54 = arith.maximumf %52, %53 : vector<2x32xf32>
    %c0_44 = arith.constant 0 : index
    %c0_45 = arith.constant 0 : index
    %55 = vector.load %arg7[%c0_44, %c0_45] : memref<32x128xf32, #tpu.memory_space<vmem>>, vector<32x128xf32>
    %cst_46 = arith.constant dense<0.000000e+00> : vector<2x128xf32>
    %56 = tpu.matmul %54, %55, %cst_46 {dimension_numbers = #tpu.dot_dimension_numbers<[1], [0], [0], [1], [0, 0, 1, 1], [], []>} : vector<2x32xf32>, vector<32x128xf32>, vector<2x128xf32> -> vector<2x128xf32>
    %c0_47 = arith.constant 0 : index
    %c0_48 = arith.constant 0 : index
    %57 = vector.load %arg8[%c0_47, %c0_48] : memref<1x128xf32, #tpu.memory_space<vmem>>, vector<1x128xf32>
    %58 = vector.broadcast %57 : vector<1x128xf32> to vector<2x128xf32>
    %59 = arith.addf %56, %58 : vector<2x128xf32>
    %c0_49 = arith.constant 0 : index
    %c0_50 = arith.constant 0 : index
    %60 = vector.load %arg9[%c0_49, %c0_50] : memref<2x128xf32, #tpu.memory_space<vmem>>, vector<2x128xf32>
    tpu.vector_store %arg9[%c0_49, %c0_50], %59 {strides = array<i32>} : memref<2x128xf32, #tpu.memory_space<vmem>>, vector<2x128xf32>,
    return
  }
}

</mosaic_0001>

<llo_original>
// kernel: forward.1
$region0: #{forward.1}
  #allocation0 [shape = 'u32[]', space=smem, size = 0x4, offset = 0x4, fixed_abs, tag = 'smem constant byte address 0x4 - core index']
  #allocation1 [shape = 'u32[72,128]{1,0:T(1,128)}', space=vmem, size = 0x9000, scoped, tag = 'internal scratch']
  #allocation2 [shape = 'f32[2,2048]{1,0:T(2,128)}', space=vmem, size = 0x4000, scoped, tag = 'scratch operand']
  #allocation3 [shape = 'f32[2048,32]{1,0:T(8,128)}', space=vmem, size = 0x100000, scoped, tag = 'scratch operand']
  #allocation4 [shape = 's32[1]{0}', space=sflag, size = 0x4, scoped, tag = 'scratch operand']
  #allocation5 [shape = 's32[]', space=sflag, size = 0x4, offset = 0, fixed_abs, tag = 'sflag constant byte address 0x0 - dummy sync flag']
  %s0 = inlined_call_operand.vmem [shape: f32[36,512], index: 0, kind: input, shape index: {}]
  %s1 = inlined_call_operand.vmem [shape: f32[8,36], index: 1, kind: input, shape index: {}]
  %s2 = inlined_call_operand.vmem [shape: f32[8,1], index: 2, kind: input, shape index: {}]
  %s3 = inlined_call_operand.vmem [shape: f32[2048,32], index: 3, kind: input, shape index: {}]
  %s4 = inlined_call_operand.vmem [shape: f32[1,32], index: 4, kind: input, shape index: {}]
  %s5 = inlined_call_operand.vmem [shape: f32[32,32], index: 5, kind: input, shape index: {}]
  %s6 = inlined_call_operand.vmem [shape: f32[1,32], index: 6, kind: input, shape index: {}]
  %s7 = inlined_call_operand.vmem [shape: f32[32,128], index: 7, kind: input, shape index: {}]
  %s8 = inlined_call_operand.vmem [shape: f32[1,128], index: 8, kind: input, shape index: {}]
  %s9 = inlined_call_operand.vmem [shape: f32[2,128], index: 9, kind: output, shape index: {}]
  %s10 = sld [smem:[#allocation0]]
  $region61: #{forward.1} parent=0
    _
  %s12 = ssub.s32 1, %s10
  %s13 = scalar_select 0, %s12, %s10
  // Predicated region
  $region2: #{forward.1} parent=0 // pred_check
    _
  $region3: #{forward.1} parent=0 // pred_check_branch
    %15 = sbr.rel (0) target = $region5
  $region4: #{forward.1} parent=0 // pred_region
    _
  $region5: #{forward.1} parent=0 // pred_fallthru
    _
  // Predicated region
  $region6: #{forward.1} parent=0 // pred_check
    _
  $region7: #{forward.1} parent=0 // pred_check_branch
    %17 = sbr.rel (0) target = $region9
  $region8: #{forward.1} parent=0 // pred_region
    _
  $region9: #{forward.1} parent=0 // pred_fallthru
    _
  // Predicated region
  $region10: #{forward.1} parent=0 // pred_check
    _
  $region11: #{forward.1} parent=0 // pred_check_branch
    %19 = sbr.rel (0) target = $region13
  $region12: #{forward.1} parent=0 // pred_region
    _
  $region13: #{forward.1} parent=0 // pred_fallthru
    _
  // Predicated region
  $region14: #{forward.1} parent=0 // pred_check
    _
  $region15: #{forward.1} parent=0 // pred_check_branch
    %21 = sbr.rel (0) target = $region17
  $region16: #{forward.1} parent=0 // pred_region
    _
  $region17: #{forward.1} parent=0 // pred_fallthru
    _
  // Predicated region
  $region18: #{forward.1} parent=0 // pred_check
    _
  $region19: #{forward.1} parent=0 // pred_check_branch
    %23 = sbr.rel (0) target = $region21
  $region20: #{forward.1} parent=0 // pred_region
    _
  $region21: #{forward.1} parent=0 // pred_fallthru
    _
  // Predicated region
  $region22: #{forward.1} parent=0 // pred_check
    _
  $region23: #{forward.1} parent=0 // pred_check_branch
    %25 = sbr.rel (0) target = $region25
  $region24: #{forward.1} parent=0 // pred_region
    _
  $region25: #{forward.1} parent=0 // pred_fallthru
    _
  // Predicated region
  $region26: #{forward.1} parent=0 // pred_check
    _
  $region27: #{forward.1} parent=0 // pred_check_branch
    %27 = sbr.rel (0) target = $region29
  $region28: #{forward.1} parent=0 // pred_region
    _
  $region29: #{forward.1} parent=0 // pred_fallthru
    _
  // Predicated region
  $region30: #{forward.1} parent=0 // pred_check
    _
  $region31: #{forward.1} parent=0 // pred_check_branch
    %29 = sbr.rel (0) target = $region33
  $region32: #{forward.1} parent=0 // pred_region
    _
  $region33: #{forward.1} parent=0 // pred_fallthru
    _
  // Predicated region
  $region34: #{forward.1} parent=0 // pred_check
    _
  $region35: #{forward.1} parent=0 // pred_check_branch
    %31 = sbr.rel (0) target = $region37
  $region36: #{forward.1} parent=0 // pred_region
    loop: start=0, step=1, limit=1
    $region38: #{forward.1} parent=36 // loop_pre_header
      _
    $region39: #{forward.1} parent=36 // loop_header
      %s33 = sphi 0, %s37
      %p34 = scmp.ge.s32.totalorder %s33, 1
      %s38 = sphi %s3, %s3
      %s39 = sphi [#allocation3], [#allocation3]
    $region40: #{forward.1} parent=36 // loop_header_branch
      %36 = sbr.rel (%p34) target = $region44
    $region41: #{forward.1} parent=36 // loop_body
      %v40 = vld [vmem:[%s38] sm:$0xff]
      %41 = vst [vmem:[%s39] sm:$0xff] %v40
      %v42 = vld [vmem:[%s38 + $0x8] sm:$0xff]
      %43 = vst [vmem:[%s39 + $0x8] sm:$0xff] %v42
      %v44 = vld [vmem:[%s38 + $0x10] sm:$0xff]
      %45 = vst [vmem:[%s39 + $0x10] sm:$0xff] %v44
      %v46 = vld [vmem:[%s38 + $0x18] sm:$0xff]
      %47 = vst [vmem:[%s39 + $0x18] sm:$0xff] %v46
      %v48 = vld [vmem:[%s38 + $0x20] sm:$0xff]
      %49 = vst [vmem:[%s39 + $0x20] sm:$0xff] %v48
      %v50 = vld [vmem:[%s38 + $0x28] sm:$0xff]
      %51 = vst [vmem:[%s39 + $0x28] sm:$0xff] %v50
      %v52 = vld [vmem:[%s38 + $0x30] sm:$0xff]
      %53 = vst [vmem:[%s39 + $0x30] sm:$0xff] %v52
      %v54 = vld [vmem:[%s38 + $0x38] sm:$0xff]
      %55 = vst [vmem:[%s39 + $0x38] sm:$0xff] %v54
      %v56 = vld [vmem:[%s38 + $0x40] sm:$0xff]
      %57 = vst [vmem:[%s39 + $0x40] sm:$0xff] %v56
      %v58 = vld [vmem:[%s38 + $0x48] sm:$0xff]
      %59 = vst [vmem:[%s39 + $0x48] sm:$0xff] %v58
      %v60 = vld [vmem:[%s38 + $0x50] sm:$0xff]
      %61 = vst [vmem:[%s39 + $0x50] sm:$0xff] %v60
      %v62 = vld [vmem:[%s38 + $0x58] sm:$0xff]
      %63 = vst [vmem:[%s39 + $0x58] sm:$0xff] %v62
      %v64 = vld [vmem:[%s38 + $0x60] sm:$0xff]
      %65 = vst [vmem:[%s39 + $0x60] sm:$0xff] %v64
      %v66 = vld [vmem:[%s38 + $0x68] sm:$0xff]
      %67 = vst [vmem:[%s39 + $0x68] sm:$0xff] %v66
      %v68 = vld [vmem:[%s38 + $0x70] sm:$0xff]
      %69 = vst [vmem:[%s39 + $0x70] sm:$0xff] %v68
      %v70 = vld [vmem:[%s38 + $0x78] sm:$0xff]
      %71 = vst [vmem:[%s39 + $0x78] sm:$0xff] %v70
      %v72 = vld [vmem:[%s38 + $0x80] sm:$0xff]
      %73 = vst [vmem:[%s39 + $0x80] sm:$0xff] %v72
      %v74 = vld [vmem:[%s38 + $0x88] sm:$0xff]
      %75 = vst [vmem:[%s39 + $0x88] sm:$0xff] %v74
      %v76 = vld [vmem:[%s38 + $0x90] sm:$0xff]
      %77 = vst [vmem:[%s39 + $0x90] sm:$0xff] %v76
      %v78 = vld [vmem:[%s38 + $0x98] sm:$0xff]
      %79 = vst [vmem:[%s39 + $0x98] sm:$0xff] %v78
      %v80 = vld [vmem:[%s38 + $0xa0] sm:$0xff]
      %81 = vst [vmem:[%s39 + $0xa0] sm:$0xff] %v80
      %v82 = vld [vmem:[%s38 + $0xa8] sm:$0xff]
      %83 = vst [vmem:[%s39 + $0xa8] sm:$0xff] %v82
      %v84 = vld [vmem:[%s38 + $0xb0] sm:$0xff]
      %85 = vst [vmem:[%s39 + $0xb0] sm:$0xff] %v84
      %v86 = vld [vmem:[%s38 + $0xb8] sm:$0xff]
      %87 = vst [vmem:[%s39 + $0xb8] sm:$0xff] %v86
      %v88 = vld [vmem:[%s38 + $0xc0] sm:$0xff]
      %89 = vst [vmem:[%s39 + $0xc0] sm:$0xff] %v88
      %v90 = vld [vmem:[%s38 + $0xc8] sm:$0xff]
      %91 = vst [vmem:[%s39 + $0xc8] sm:$0xff] %v90
      %v92 = vld [vmem:[%s38 + $0xd0] sm:$0xff]
      %93 = vst [vmem:[%s39 + $0xd0] sm:$0xff] %v92
      %v94 = vld [vmem:[%s38 + $0xd8] sm:$0xff]
      %95 = vst [vmem:[%s39 + $0xd8] sm:$0xff] %v94
      %v96 = vld [vmem:[%s38 + $0xe0] sm:$0xff]
      %97 = vst [vmem:[%s39 + $0xe0] sm:$0xff] %v96
      %v98 = vld [vmem:[%s38 + $0xe8] sm:$0xff]
      %99 = vst [vmem:[%s39 + $0xe8] sm:$0xff] %v98
      %v100 = vld [vmem:[%s38 + $0xf0] sm:$0xff]
      %101 = vst [vmem:[%s39 + $0xf0] sm:$0xff] %v100
      %v102 = vld [vmem:[%s38 + $0xf8] sm:$0xff]
      %103 = vst [vmem:[%s39 + $0xf8] sm:$0xff] %v102
      %v104 = vld [vmem:[%s38 + $0x100] sm:$0xff]
      %105 = vst [vmem:[%s39 + $0x100] sm:$0xff] %v104
      %v106 = vld [vmem:[%s38 + $0x108] sm:$0xff]
      %107 = vst [vmem:[%s39 + $0x108] sm:$0xff] %v106
      %v108 = vld [vmem:[%s38 + $0x110] sm:$0xff]
      %109 = vst [vmem:[%s39 + $0x110] sm:$0xff] %v108
      %v110 = vld [vmem:[%s38 + $0x118] sm:$0xff]
      %111 = vst [vmem:[%s39 + $0x118] sm:$0xff] %v110
      %v112 = vld [vmem:[%s38 + $0x120] sm:$0xff]
      %113 = vst [vmem:[%s39 + $0x120] sm:$0xff] %v112
      %v114 = vld [vmem:[%s38 + $0x128] sm:$0xff]
      %115 = vst [vmem:[%s39 + $0x128] sm:$0xff] %v114
      %v116 = vld [vmem:[%s38 + $0x130] sm:$0xff]
      %117 = vst [vmem:[%s39 + $0x130] sm:$0xff] %v116
      %v118 = vld [vmem:[%s38 + $0x138] sm:$0xff]
      %119 = vst [vmem:[%s39 + $0x138] sm:$0xff] %v118
      %v120 = vld [vmem:[%s38 + $0x140] sm:$0xff]
      %121 = vst [vmem:[%s39 + $0x140] sm:$0xff] %v120
      %v122 = vld [vmem:[%s38 + $0x148] sm:$0xff]
      %123 = vst [vmem:[%s39 + $0x148] sm:$0xff] %v122
      %v124 = vld [vmem:[%s38 + $0x150] sm:$0xff]
      %125 = vst [vmem:[%s39 + $0x150] sm:$0xff] %v124
      %v126 = vld [vmem:[%s38 + $0x158] sm:$0xff]
      %127 = vst [vmem:[%s39 + $0x158] sm:$0xff] %v126
      %v128 = vld [vmem:[%s38 + $0x160] sm:$0xff]
      %129 = vst [vmem:[%s39 + $0x160] sm:$0xff] %v128
      %v130 = vld [vmem:[%s38 + $0x168] sm:$0xff]
      %131 = vst [vmem:[%s39 + $0x168] sm:$0xff] %v130
      %v132 = vld [vmem:[%s38 + $0x170] sm:$0xff]
      %133 = vst [vmem:[%s39 + $0x170] sm:$0xff] %v132
      %v134 = vld [vmem:[%s38 + $0x178] sm:$0xff]
      %135 = vst [vmem:[%s39 + $0x178] sm:$0xff] %v134
      %v136 = vld [vmem:[%s38 + $0x180] sm:$0xff]
      %137 = vst [vmem:[%s39 + $0x180] sm:$0xff] %v136
      %v138 = vld [vmem:[%s38 + $0x188] sm:$0xff]
      %139 = vst [vmem:[%s39 + $0x188] sm:$0xff] %v138
      %v140 = vld [vmem:[%s38 + $0x190] sm:$0xff]
      %141 = vst [vmem:[%s39 + $0x190] sm:$0xff] %v140
      %v142 = vld [vmem:[%s38 + $0x198] sm:$0xff]
      %143 = vst [vmem:[%s39 + $0x198] sm:$0xff] %v142
      %v144 = vld [vmem:[%s38 + $0x1a0] sm:$0xff]
      %145 = vst [vmem:[%s39 + $0x1a0] sm:$0xff] %v144
      %v146 = vld [vmem:[%s38 + $0x1a8] sm:$0xff]
      %147 = vst [vmem:[%s39 + $0x1a8] sm:$0xff] %v146
      %v148 = vld [vmem:[%s38 + $0x1b0] sm:$0xff]
      %149 = vst [vmem:[%s39 + $0x1b0] sm:$0xff] %v148
      %v150 = vld [vmem:[%s38 + $0x1b8] sm:$0xff]
      %151 = vst [vmem:[%s39 + $0x1b8] sm:$0xff] %v150
      %v152 = vld [vmem:[%s38 + $0x1c0] sm:$0xff]
      %153 = vst [vmem:[%s39 + $0x1c0] sm:$0xff] %v152
      %v154 = vld [vmem:[%s38 + $0x1c8] sm:$0xff]
      %155 = vst [vmem:[%s39 + $0x1c8] sm:$0xff] %v154
      %v156 = vld [vmem:[%s38 + $0x1d0] sm:$0xff]
      %157 = vst [vmem:[%s39 + $0x1d0] sm:$0xff] %v156
      %v158 = vld [vmem:[%s38 + $0x1d8] sm:$0xff]
      %159 = vst [vmem:[%s39 + $0x1d8] sm:$0xff] %v158
      %v160 = vld [vmem:[%s38 + $0x1e0] sm:$0xff]
      %161 = vst [vmem:[%s39 + $0x1e0] sm:$0xff] %v160
      %v162 = vld [vmem:[%s38 + $0x1e8] sm:$0xff]
      %163 = vst [vmem:[%s39 + $0x1e8] sm:$0xff] %v162
      %v164 = vld [vmem:[%s38 + $0x1f0] sm:$0xff]
      %165 = vst [vmem:[%s39 + $0x1f0] sm:$0xff] %v164
      %v166 = vld [vmem:[%s38 + $0x1f8] sm:$0xff]
      %167 = vst [vmem:[%s39 + $0x1f8] sm:$0xff] %v166
      %v168 = vld [vmem:[%s38 + $0x200] sm:$0xff]
      %169 = vst [vmem:[%s39 + $0x200] sm:$0xff] %v168
      %v170 = vld [vmem:[%s38 + $0x208] sm:$0xff]
      %171 = vst [vmem:[%s39 + $0x208] sm:$0xff] %v170
      %v172 = vld [vmem:[%s38 + $0x210] sm:$0xff]
      %173 = vst [vmem:[%s39 + $0x210] sm:$0xff] %v172
      %v174 = vld [vmem:[%s38 + $0x218] sm:$0xff]
      %175 = vst [vmem:[%s39 + $0x218] sm:$0xff] %v174
      %v176 = vld [vmem:[%s38 + $0x220] sm:$0xff]
      %177 = vst [vmem:[%s39 + $0x220] sm:$0xff] %v176
      %v178 = vld [vmem:[%s38 + $0x228] sm:$0xff]
      %179 = vst [vmem:[%s39 + $0x228] sm:$0xff] %v178
      %v180 = vld [vmem:[%s38 + $0x230] sm:$0xff]
      %181 = vst [vmem:[%s39 + $0x230] sm:$0xff] %v180
      %v182 = vld [vmem:[%s38 + $0x238] sm:$0xff]
      %183 = vst [vmem:[%s39 + $0x238] sm:$0xff] %v182
      %v184 = vld [vmem:[%s38 + $0x240] sm:$0xff]
      %185 = vst [vmem:[%s39 + $0x240] sm:$0xff] %v184
      %v186 = vld [vmem:[%s38 + $0x248] sm:$0xff]
      %187 = vst [vmem:[%s39 + $0x248] sm:$0xff] %v186
      %v188 = vld [vmem:[%s38 + $0x250] sm:$0xff]
      %189 = vst [vmem:[%s39 + $0x250] sm:$0xff] %v188
      %v190 = vld [vmem:[%s38 + $0x258] sm:$0xff]
      %191 = vst [vmem:[%s39 + $0x258] sm:$0xff] %v190
      %v192 = vld [vmem:[%s38 + $0x260] sm:$0xff]
      %193 = vst [vmem:[%s39 + $0x260] sm:$0xff] %v192
      %v194 = vld [vmem:[%s38 + $0x268] sm:$0xff]
      %195 = vst [vmem:[%s39 + $0x268] sm:$0xff] %v194
      %v196 = vld [vmem:[%s38 + $0x270] sm:$0xff]
      %197 = vst [vmem:[%s39 + $0x270] sm:$0xff] %v196
      %v198 = vld [vmem:[%s38 + $0x278] sm:$0xff]
      %199 = vst [vmem:[%s39 + $0x278] sm:$0xff] %v198
      %v200 = vld [vmem:[%s38 + $0x280] sm:$0xff]
      %201 = vst [vmem:[%s39 + $0x280] sm:$0xff] %v200
      %v202 = vld [vmem:[%s38 + $0x288] sm:$0xff]
      %203 = vst [vmem:[%s39 + $0x288] sm:$0xff] %v202
      %v204 = vld [vmem:[%s38 + $0x290] sm:$0xff]
      %205 = vst [vmem:[%s39 + $0x290] sm:$0xff] %v204
      %v206 = vld [vmem:[%s38 + $0x298] sm:$0xff]
      %207 = vst [vmem:[%s39 + $0x298] sm:$0xff] %v206
      %v208 = vld [vmem:[%s38 + $0x2a0] sm:$0xff]
      %209 = vst [vmem:[%s39 + $0x2a0] sm:$0xff] %v208
      %v210 = vld [vmem:[%s38 + $0x2a8] sm:$0xff]
      %211 = vst [vmem:[%s39 + $0x2a8] sm:$0xff] %v210
      %v212 = vld [vmem:[%s38 + $0x2b0] sm:$0xff]
      %213 = vst [vmem:[%s39 + $0x2b0] sm:$0xff] %v212
      %v214 = vld [vmem:[%s38 + $0x2b8] sm:$0xff]
      %215 = vst [vmem:[%s39 + $0x2b8] sm:$0xff] %v214
      %v216 = vld [vmem:[%s38 + $0x2c0] sm:$0xff]
      %217 = vst [vmem:[%s39 + $0x2c0] sm:$0xff] %v216
      %v218 = vld [vmem:[%s38 + $0x2c8] sm:$0xff]
      %219 = vst [vmem:[%s39 + $0x2c8] sm:$0xff] %v218
      %v220 = vld [vmem:[%s38 + $0x2d0] sm:$0xff]
      %221 = vst [vmem:[%s39 + $0x2d0] sm:$0xff] %v220
      %v222 = vld [vmem:[%s38 + $0x2d8] sm:$0xff]
      %223 = vst [vmem:[%s39 + $0x2d8] sm:$0xff] %v222
      %v224 = vld [vmem:[%s38 + $0x2e0] sm:$0xff]
      %225 = vst [vmem:[%s39 + $0x2e0] sm:$0xff] %v224
      %v226 = vld [vmem:[%s38 + $0x2e8] sm:$0xff]
      %227 = vst [vmem:[%s39 + $0x2e8] sm:$0xff] %v226
      %v228 = vld [vmem:[%s38 + $0x2f0] sm:$0xff]
      %229 = vst [vmem:[%s39 + $0x2f0] sm:$0xff] %v228
      %v230 = vld [vmem:[%s38 + $0x2f8] sm:$0xff]
      %231 = vst [vmem:[%s39 + $0x2f8] sm:$0xff] %v230
      %v232 = vld [vmem:[%s38 + $0x300] sm:$0xff]
      %233 = vst [vmem:[%s39 + $0x300] sm:$0xff] %v232
      %v234 = vld [vmem:[%s38 + $0x308] sm:$0xff]
      %235 = vst [vmem:[%s39 + $0x308] sm:$0xff] %v234
      %v236 = vld [vmem:[%s38 + $0x310] sm:$0xff]
      %237 = vst [vmem:[%s39 + $0x310] sm:$0xff] %v236
      %v238 = vld [vmem:[%s38 + $0x318] sm:$0xff]
      %239 = vst [vmem:[%s39 + $0x318] sm:$0xff] %v238
      %v240 = vld [vmem:[%s38 + $0x320] sm:$0xff]
      %241 = vst [vmem:[%s39 + $0x320] sm:$0xff] %v240
      %v242 = vld [vmem:[%s38 + $0x328] sm:$0xff]
      %243 = vst [vmem:[%s39 + $0x328] sm:$0xff] %v242
      %v244 = vld [vmem:[%s38 + $0x330] sm:$0xff]
      %245 = vst [vmem:[%s39 + $0x330] sm:$0xff] %v244
      %v246 = vld [vmem:[%s38 + $0x338] sm:$0xff]
      %247 = vst [vmem:[%s39 + $0x338] sm:$0xff] %v246
      %v248 = vld [vmem:[%s38 + $0x340] sm:$0xff]
      %249 = vst [vmem:[%s39 + $0x340] sm:$0xff] %v248
      %v250 = vld [vmem:[%s38 + $0x348] sm:$0xff]
      %251 = vst [vmem:[%s39 + $0x348] sm:$0xff] %v250
      %v252 = vld [vmem:[%s38 + $0x350] sm:$0xff]
      %253 = vst [vmem:[%s39 + $0x350] sm:$0xff] %v252
      %v254 = vld [vmem:[%s38 + $0x358] sm:$0xff]
      %255 = vst [vmem:[%s39 + $0x358] sm:$0xff] %v254
      %v256 = vld [vmem:[%s38 + $0x360] sm:$0xff]
      %257 = vst [vmem:[%s39 + $0x360] sm:$0xff] %v256
      %v258 = vld [vmem:[%s38 + $0x368] sm:$0xff]
      %259 = vst [vmem:[%s39 + $0x368] sm:$0xff] %v258
      %v260 = vld [vmem:[%s38 + $0x370] sm:$0xff]
      %261 = vst [vmem:[%s39 + $0x370] sm:$0xff] %v260
      %v262 = vld [vmem:[%s38 + $0x378] sm:$0xff]
      %263 = vst [vmem:[%s39 + $0x378] sm:$0xff] %v262
      %v264 = vld [vmem:[%s38 + $0x380] sm:$0xff]
      %265 = vst [vmem:[%s39 + $0x380] sm:$0xff] %v264
      %v266 = vld [vmem:[%s38 + $0x388] sm:$0xff]
      %267 = vst [vmem:[%s39 + $0x388] sm:$0xff] %v266
      %v268 = vld [vmem:[%s38 + $0x390] sm:$0xff]
      %269 = vst [vmem:[%s39 + $0x390] sm:$0xff] %v268
      %v270 = vld [vmem:[%s38 + $0x398] sm:$0xff]
      %271 = vst [vmem:[%s39 + $0x398] sm:$0xff] %v270
      %v272 = vld [vmem:[%s38 + $0x3a0] sm:$0xff]
      %273 = vst [vmem:[%s39 + $0x3a0] sm:$0xff] %v272
      %v274 = vld [vmem:[%s38 + $0x3a8] sm:$0xff]
      %275 = vst [vmem:[%s39 + $0x3a8] sm:$0xff] %v274
      %v276 = vld [vmem:[%s38 + $0x3b0] sm:$0xff]
      %277 = vst [vmem:[%s39 + $0x3b0] sm:$0xff] %v276
      %v278 = vld [vmem:[%s38 + $0x3b8] sm:$0xff]
      %279 = vst [vmem:[%s39 + $0x3b8] sm:$0xff] %v278
      %v280 = vld [vmem:[%s38 + $0x3c0] sm:$0xff]
      %281 = vst [vmem:[%s39 + $0x3c0] sm:$0xff] %v280
      %v282 = vld [vmem:[%s38 + $0x3c8] sm:$0xff]
      %283 = vst [vmem:[%s39 + $0x3c8] sm:$0xff] %v282
      %v284 = vld [vmem:[%s38 + $0x3d0] sm:$0xff]
      %285 = vst [vmem:[%s39 + $0x3d0] sm:$0xff] %v284
      %v286 = vld [vmem:[%s38 + $0x3d8] sm:$0xff]
      %287 = vst [vmem:[%s39 + $0x3d8] sm:$0xff] %v286
      %v288 = vld [vmem:[%s38 + $0x3e0] sm:$0xff]
      %289 = vst [vmem:[%s39 + $0x3e0] sm:$0xff] %v288
      %v290 = vld [vmem:[%s38 + $0x3e8] sm:$0xff]
      %291 = vst [vmem:[%s39 + $0x3e8] sm:$0xff] %v290
      %v292 = vld [vmem:[%s38 + $0x3f0] sm:$0xff]
      %293 = vst [vmem:[%s39 + $0x3f0] sm:$0xff] %v292
      %v294 = vld [vmem:[%s38 + $0x3f8] sm:$0xff]
      %295 = vst [vmem:[%s39 + $0x3f8] sm:$0xff] %v294
      %v296 = vld [vmem:[%s38 + $0x400] sm:$0xff]
      %297 = vst [vmem:[%s39 + $0x400] sm:$0xff] %v296
      %v298 = vld [vmem:[%s38 + $0x408] sm:$0xff]
      %299 = vst [vmem:[%s39 + $0x408] sm:$0xff] %v298
      %v300 = vld [vmem:[%s38 + $0x410] sm:$0xff]
      %301 = vst [vmem:[%s39 + $0x410] sm:$0xff] %v300
      %v302 = vld [vmem:[%s38 + $0x418] sm:$0xff]
      %303 = vst [vmem:[%s39 + $0x418] sm:$0xff] %v302
      %v304 = vld [vmem:[%s38 + $0x420] sm:$0xff]
      %305 = vst [vmem:[%s39 + $0x420] sm:$0xff] %v304
      %v306 = vld [vmem:[%s38 + $0x428] sm:$0xff]
      %307 = vst [vmem:[%s39 + $0x428] sm:$0xff] %v306
      %v308 = vld [vmem:[%s38 + $0x430] sm:$0xff]
      %309 = vst [vmem:[%s39 + $0x430] sm:$0xff] %v308
      %v310 = vld [vmem:[%s38 + $0x438] sm:$0xff]
      %311 = vst [vmem:[%s39 + $0x438] sm:$0xff] %v310
      %v312 = vld [vmem:[%s38 + $0x440] sm:$0xff]
      %313 = vst [vmem:[%s39 + $0x440] sm:$0xff] %v312
      %v314 = vld [vmem:[%s38 + $0x448] sm:$0xff]
      %315 = vst [vmem:[%s39 + $0x448] sm:$0xff] %v314
      %v316 = vld [vmem:[%s38 + $0x450] sm:$0xff]
      %317 = vst [vmem:[%s39 + $0x450] sm:$0xff] %v316
      %v318 = vld [vmem:[%s38 + $0x458] sm:$0xff]
      %319 = vst [vmem:[%s39 + $0x458] sm:$0xff] %v318
      %v320 = vld [vmem:[%s38 + $0x460] sm:$0xff]
      %321 = vst [vmem:[%s39 + $0x460] sm:$0xff] %v320
      %v322 = vld [vmem:[%s38 + $0x468] sm:$0xff]
      %323 = vst [vmem:[%s39 + $0x468] sm:$0xff] %v322
      %v324 = vld [vmem:[%s38 + $0x470] sm:$0xff]
      %325 = vst [vmem:[%s39 + $0x470] sm:$0xff] %v324
      %v326 = vld [vmem:[%s38 + $0x478] sm:$0xff]
      %327 = vst [vmem:[%s39 + $0x478] sm:$0xff] %v326
      %v328 = vld [vmem:[%s38 + $0x480] sm:$0xff]
      %329 = vst [vmem:[%s39 + $0x480] sm:$0xff] %v328
      %v330 = vld [vmem:[%s38 + $0x488] sm:$0xff]
      %331 = vst [vmem:[%s39 + $0x488] sm:$0xff] %v330
      %v332 = vld [vmem:[%s38 + $0x490] sm:$0xff]
      %333 = vst [vmem:[%s39 + $0x490] sm:$0xff] %v332
      %v334 = vld [vmem:[%s38 + $0x498] sm:$0xff]
      %335 = vst [vmem:[%s39 + $0x498] sm:$0xff] %v334
      %v336 = vld [vmem:[%s38 + $0x4a0] sm:$0xff]
      %337 = vst [vmem:[%s39 + $0x4a0] sm:$0xff] %v336
      %v338 = vld [vmem:[%s38 + $0x4a8] sm:$0xff]
      %339 = vst [vmem:[%s39 + $0x4a8] sm:$0xff] %v338
      %v340 = vld [vmem:[%s38 + $0x4b0] sm:$0xff]
      %341 = vst [vmem:[%s39 + $0x4b0] sm:$0xff] %v340
      %v342 = vld [vmem:[%s38 + $0x4b8] sm:$0xff]
      %343 = vst [vmem:[%s39 + $0x4b8] sm:$0xff] %v342
      %v344 = vld [vmem:[%s38 + $0x4c0] sm:$0xff]
      %345 = vst [vmem:[%s39 + $0x4c0] sm:$0xff] %v344
      %v346 = vld [vmem:[%s38 + $0x4c8] sm:$0xff]
      %347 = vst [vmem:[%s39 + $0x4c8] sm:$0xff] %v346
      %v348 = vld [vmem:[%s38 + $0x4d0] sm:$0xff]
      %349 = vst [vmem:[%s39 + $0x4d0] sm:$0xff] %v348
      %v350 = vld [vmem:[%s38 + $0x4d8] sm:$0xff]
      %351 = vst [vmem:[%s39 + $0x4d8] sm:$0xff] %v350
      %v352 = vld [vmem:[%s38 + $0x4e0] sm:$0xff]
      %353 = vst [vmem:[%s39 + $0x4e0] sm:$0xff] %v352
      %v354 = vld [vmem:[%s38 + $0x4e8] sm:$0xff]
      %355 = vst [vmem:[%s39 + $0x4e8] sm:$0xff] %v354
      %v356 = vld [vmem:[%s38 + $0x4f0] sm:$0xff]
      %357 = vst [vmem:[%s39 + $0x4f0] sm:$0xff] %v356
      %v358 = vld [vmem:[%s38 + $0x4f8] sm:$0xff]
      %359 = vst [vmem:[%s39 + $0x4f8] sm:$0xff] %v358
      %v360 = vld [vmem:[%s38 + $0x500] sm:$0xff]
      %361 = vst [vmem:[%s39 + $0x500] sm:$0xff] %v360
      %v362 = vld [vmem:[%s38 + $0x508] sm:$0xff]
      %363 = vst [vmem:[%s39 + $0x508] sm:$0xff] %v362
      %v364 = vld [vmem:[%s38 + $0x510] sm:$0xff]
      %365 = vst [vmem:[%s39 + $0x510] sm:$0xff] %v364
      %v366 = vld [vmem:[%s38 + $0x518] sm:$0xff]
      %367 = vst [vmem:[%s39 + $0x518] sm:$0xff] %v366
      %v368 = vld [vmem:[%s38 + $0x520] sm:$0xff]
      %369 = vst [vmem:[%s39 + $0x520] sm:$0xff] %v368
      %v370 = vld [vmem:[%s38 + $0x528] sm:$0xff]
      %371 = vst [vmem:[%s39 + $0x528] sm:$0xff] %v370
      %v372 = vld [vmem:[%s38 + $0x530] sm:$0xff]
      %373 = vst [vmem:[%s39 + $0x530] sm:$0xff] %v372
      %v374 = vld [vmem:[%s38 + $0x538] sm:$0xff]
      %375 = vst [vmem:[%s39 + $0x538] sm:$0xff] %v374
      %v376 = vld [vmem:[%s38 + $0x540] sm:$0xff]
      %377 = vst [vmem:[%s39 + $0x540] sm:$0xff] %v376
      %v378 = vld [vmem:[%s38 + $0x548] sm:$0xff]
      %379 = vst [vmem:[%s39 + $0x548] sm:$0xff] %v378
      %v380 = vld [vmem:[%s38 + $0x550] sm:$0xff]
      %381 = vst [vmem:[%s39 + $0x550] sm:$0xff] %v380
      %v382 = vld [vmem:[%s38 + $0x558] sm:$0xff]
      %383 = vst [vmem:[%s39 + $0x558] sm:$0xff] %v382
      %v384 = vld [vmem:[%s38 + $0x560] sm:$0xff]
      %385 = vst [vmem:[%s39 + $0x560] sm:$0xff] %v384
      %v386 = vld [vmem:[%s38 + $0x568] sm:$0xff]
      %387 = vst [vmem:[%s39 + $0x568] sm:$0xff] %v386
      %v388 = vld [vmem:[%s38 + $0x570] sm:$0xff]
      %389 = vst [vmem:[%s39 + $0x570] sm:$0xff] %v388
      %v390 = vld [vmem:[%s38 + $0x578] sm:$0xff]
      %391 = vst [vmem:[%s39 + $0x578] sm:$0xff] %v390
      %v392 = vld [vmem:[%s38 + $0x580] sm:$0xff]
      %393 = vst [vmem:[%s39 + $0x580] sm:$0xff] %v392
      %v394 = vld [vmem:[%s38 + $0x588] sm:$0xff]
      %395 = vst [vmem:[%s39 + $0x588] sm:$0xff] %v394
      %v396 = vld [vmem:[%s38 + $0x590] sm:$0xff]
      %397 = vst [vmem:[%s39 + $0x590] sm:$0xff] %v396
      %v398 = vld [vmem:[%s38 + $0x598] sm:$0xff]
      %399 = vst [vmem:[%s39 + $0x598] sm:$0xff] %v398
      %v400 = vld [vmem:[%s38 + $0x5a0] sm:$0xff]
      %401 = vst [vmem:[%s39 + $0x5a0] sm:$0xff] %v400
      %v402 = vld [vmem:[%s38 + $0x5a8] sm:$0xff]
      %403 = vst [vmem:[%s39 + $0x5a8] sm:$0xff] %v402
      %v404 = vld [vmem:[%s38 + $0x5b0] sm:$0xff]
      %405 = vst [vmem:[%s39 + $0x5b0] sm:$0xff] %v404
      %v406 = vld [vmem:[%s38 + $0x5b8] sm:$0xff]
      %407 = vst [vmem:[%s39 + $0x5b8] sm:$0xff] %v406
      %v408 = vld [vmem:[%s38 + $0x5c0] sm:$0xff]
      %409 = vst [vmem:[%s39 + $0x5c0] sm:$0xff] %v408
      %v410 = vld [vmem:[%s38 + $0x5c8] sm:$0xff]
      %411 = vst [vmem:[%s39 + $0x5c8] sm:$0xff] %v410
      %v412 = vld [vmem:[%s38 + $0x5d0] sm:$0xff]
      %413 = vst [vmem:[%s39 + $0x5d0] sm:$0xff] %v412
      %v414 = vld [vmem:[%s38 + $0x5d8] sm:$0xff]
      %415 = vst [vmem:[%s39 + $0x5d8] sm:$0xff] %v414
      %v416 = vld [vmem:[%s38 + $0x5e0] sm:$0xff]
      %417 = vst [vmem:[%s39 + $0x5e0] sm:$0xff] %v416
      %v418 = vld [vmem:[%s38 + $0x5e8] sm:$0xff]
      %419 = vst [vmem:[%s39 + $0x5e8] sm:$0xff] %v418
      %v420 = vld [vmem:[%s38 + $0x5f0] sm:$0xff]
      %421 = vst [vmem:[%s39 + $0x5f0] sm:$0xff] %v420
      %v422 = vld [vmem:[%s38 + $0x5f8] sm:$0xff]
      %423 = vst [vmem:[%s39 + $0x5f8] sm:$0xff] %v422
      %v424 = vld [vmem:[%s38 + $0x600] sm:$0xff]
      %425 = vst [vmem:[%s39 + $0x600] sm:$0xff] %v424
      %v426 = vld [vmem:[%s38 + $0x608] sm:$0xff]
      %427 = vst [vmem:[%s39 + $0x608] sm:$0xff] %v426
      %v428 = vld [vmem:[%s38 + $0x610] sm:$0xff]
      %429 = vst [vmem:[%s39 + $0x610] sm:$0xff] %v428
      %v430 = vld [vmem:[%s38 + $0x618] sm:$0xff]
      %431 = vst [vmem:[%s39 + $0x618] sm:$0xff] %v430
      %v432 = vld [vmem:[%s38 + $0x620] sm:$0xff]
      %433 = vst [vmem:[%s39 + $0x620] sm:$0xff] %v432
      %v434 = vld [vmem:[%s38 + $0x628] sm:$0xff]
      %435 = vst [vmem:[%s39 + $0x628] sm:$0xff] %v434
      %v436 = vld [vmem:[%s38 + $0x630] sm:$0xff]
      %437 = vst [vmem:[%s39 + $0x630] sm:$0xff] %v436
      %v438 = vld [vmem:[%s38 + $0x638] sm:$0xff]
      %439 = vst [vmem:[%s39 + $0x638] sm:$0xff] %v438
      %v440 = vld [vmem:[%s38 + $0x640] sm:$0xff]
      %441 = vst [vmem:[%s39 + $0x640] sm:$0xff] %v440
      %v442 = vld [vmem:[%s38 + $0x648] sm:$0xff]
      %443 = vst [vmem:[%s39 + $0x648] sm:$0xff] %v442
      %v444 = vld [vmem:[%s38 + $0x650] sm:$0xff]
      %445 = vst [vmem:[%s39 + $0x650] sm:$0xff] %v444
      %v446 = vld [vmem:[%s38 + $0x658] sm:$0xff]
      %447 = vst [vmem:[%s39 + $0x658] sm:$0xff] %v446
      %v448 = vld [vmem:[%s38 + $0x660] sm:$0xff]
      %449 = vst [vmem:[%s39 + $0x660] sm:$0xff] %v448
      %v450 = vld [vmem:[%s38 + $0x668] sm:$0xff]
      %451 = vst [vmem:[%s39 + $0x668] sm:$0xff] %v450
      %v452 = vld [vmem:[%s38 + $0x670] sm:$0xff]
      %453 = vst [vmem:[%s39 + $0x670] sm:$0xff] %v452
      %v454 = vld [vmem:[%s38 + $0x678] sm:$0xff]
      %455 = vst [vmem:[%s39 + $0x678] sm:$0xff] %v454
      %v456 = vld [vmem:[%s38 + $0x680] sm:$0xff]
      %457 = vst [vmem:[%s39 + $0x680] sm:$0xff] %v456
      %v458 = vld [vmem:[%s38 + $0x688] sm:$0xff]
      %459 = vst [vmem:[%s39 + $0x688] sm:$0xff] %v458
      %v460 = vld [vmem:[%s38 + $0x690] sm:$0xff]
      %461 = vst [vmem:[%s39 + $0x690] sm:$0xff] %v460
      %v462 = vld [vmem:[%s38 + $0x698] sm:$0xff]
      %463 = vst [vmem:[%s39 + $0x698] sm:$0xff] %v462
      %v464 = vld [vmem:[%s38 + $0x6a0] sm:$0xff]
      %465 = vst [vmem:[%s39 + $0x6a0] sm:$0xff] %v464
      %v466 = vld [vmem:[%s38 + $0x6a8] sm:$0xff]
      %467 = vst [vmem:[%s39 + $0x6a8] sm:$0xff] %v466
      %v468 = vld [vmem:[%s38 + $0x6b0] sm:$0xff]
      %469 = vst [vmem:[%s39 + $0x6b0] sm:$0xff] %v468
      %v470 = vld [vmem:[%s38 + $0x6b8] sm:$0xff]
      %471 = vst [vmem:[%s39 + $0x6b8] sm:$0xff] %v470
      %v472 = vld [vmem:[%s38 + $0x6c0] sm:$0xff]
      %473 = vst [vmem:[%s39 + $0x6c0] sm:$0xff] %v472
      %v474 = vld [vmem:[%s38 + $0x6c8] sm:$0xff]
      %475 = vst [vmem:[%s39 + $0x6c8] sm:$0xff] %v474
      %v476 = vld [vmem:[%s38 + $0x6d0] sm:$0xff]
      %477 = vst [vmem:[%s39 + $0x6d0] sm:$0xff] %v476
      %v478 = vld [vmem:[%s38 + $0x6d8] sm:$0xff]
      %479 = vst [vmem:[%s39 + $0x6d8] sm:$0xff] %v478
      %v480 = vld [vmem:[%s38 + $0x6e0] sm:$0xff]
      %481 = vst [vmem:[%s39 + $0x6e0] sm:$0xff] %v480
      %v482 = vld [vmem:[%s38 + $0x6e8] sm:$0xff]
      %483 = vst [vmem:[%s39 + $0x6e8] sm:$0xff] %v482
      %v484 = vld [vmem:[%s38 + $0x6f0] sm:$0xff]
      %485 = vst [vmem:[%s39 + $0x6f0] sm:$0xff] %v484
      %v486 = vld [vmem:[%s38 + $0x6f8] sm:$0xff]
      %487 = vst [vmem:[%s39 + $0x6f8] sm:$0xff] %v486
      %v488 = vld [vmem:[%s38 + $0x700] sm:$0xff]
      %489 = vst [vmem:[%s39 + $0x700] sm:$0xff] %v488
      %v490 = vld [vmem:[%s38 + $0x708] sm:$0xff]
      %491 = vst [vmem:[%s39 + $0x708] sm:$0xff] %v490
      %v492 = vld [vmem:[%s38 + $0x710] sm:$0xff]
      %493 = vst [vmem:[%s39 + $0x710] sm:$0xff] %v492
      %v494 = vld [vmem:[%s38 + $0x718] sm:$0xff]
      %495 = vst [vmem:[%s39 + $0x718] sm:$0xff] %v494
      %v496 = vld [vmem:[%s38 + $0x720] sm:$0xff]
      %497 = vst [vmem:[%s39 + $0x720] sm:$0xff] %v496
      %v498 = vld [vmem:[%s38 + $0x728] sm:$0xff]
      %499 = vst [vmem:[%s39 + $0x728] sm:$0xff] %v498
      %v500 = vld [vmem:[%s38 + $0x730] sm:$0xff]
      %501 = vst [vmem:[%s39 + $0x730] sm:$0xff] %v500
      %v502 = vld [vmem:[%s38 + $0x738] sm:$0xff]
      %503 = vst [vmem:[%s39 + $0x738] sm:$0xff] %v502
      %v504 = vld [vmem:[%s38 + $0x740] sm:$0xff]
      %505 = vst [vmem:[%s39 + $0x740] sm:$0xff] %v504
      %v506 = vld [vmem:[%s38 + $0x748] sm:$0xff]
      %507 = vst [vmem:[%s39 + $0x748] sm:$0xff] %v506
      %v508 = vld [vmem:[%s38 + $0x750] sm:$0xff]
      %509 = vst [vmem:[%s39 + $0x750] sm:$0xff] %v508
      %v510 = vld [vmem:[%s38 + $0x758] sm:$0xff]
      %511 = vst [vmem:[%s39 + $0x758] sm:$0xff] %v510
      %v512 = vld [vmem:[%s38 + $0x760] sm:$0xff]
      %513 = vst [vmem:[%s39 + $0x760] sm:$0xff] %v512
      %v514 = vld [vmem:[%s38 + $0x768] sm:$0xff]
      %515 = vst [vmem:[%s39 + $0x768] sm:$0xff] %v514
      %v516 = vld [vmem:[%s38 + $0x770] sm:$0xff]
      %517 = vst [vmem:[%s39 + $0x770] sm:$0xff] %v516
      %v518 = vld [vmem:[%s38 + $0x778] sm:$0xff]
      %519 = vst [vmem:[%s39 + $0x778] sm:$0xff] %v518
      %v520 = vld [vmem:[%s38 + $0x780] sm:$0xff]
      %521 = vst [vmem:[%s39 + $0x780] sm:$0xff] %v520
      %v522 = vld [vmem:[%s38 + $0x788] sm:$0xff]
      %523 = vst [vmem:[%s39 + $0x788] sm:$0xff] %v522
      %v524 = vld [vmem:[%s38 + $0x790] sm:$0xff]
      %525 = vst [vmem:[%s39 + $0x790] sm:$0xff] %v524
      %v526 = vld [vmem:[%s38 + $0x798] sm:$0xff]
      %527 = vst [vmem:[%s39 + $0x798] sm:$0xff] %v526
      %v528 = vld [vmem:[%s38 + $0x7a0] sm:$0xff]
      %529 = vst [vmem:[%s39 + $0x7a0] sm:$0xff] %v528
      %v530 = vld [vmem:[%s38 + $0x7a8] sm:$0xff]
      %531 = vst [vmem:[%s39 + $0x7a8] sm:$0xff] %v530
      %v532 = vld [vmem:[%s38 + $0x7b0] sm:$0xff]
      %533 = vst [vmem:[%s39 + $0x7b0] sm:$0xff] %v532
      %v534 = vld [vmem:[%s38 + $0x7b8] sm:$0xff]
      %535 = vst [vmem:[%s39 + $0x7b8] sm:$0xff] %v534
      %v536 = vld [vmem:[%s38 + $0x7c0] sm:$0xff]
      %537 = vst [vmem:[%s39 + $0x7c0] sm:$0xff] %v536
      %v538 = vld [vmem:[%s38 + $0x7c8] sm:$0xff]
      %539 = vst [vmem:[%s39 + $0x7c8] sm:$0xff] %v538
      %v540 = vld [vmem:[%s38 + $0x7d0] sm:$0xff]
      %541 = vst [vmem:[%s39 + $0x7d0] sm:$0xff] %v540
      %v542 = vld [vmem:[%s38 + $0x7d8] sm:$0xff]
      %543 = vst [vmem:[%s39 + $0x7d8] sm:$0xff] %v542
      %v544 = vld [vmem:[%s38 + $0x7e0] sm:$0xff]
      %545 = vst [vmem:[%s39 + $0x7e0] sm:$0xff] %v544
      %v546 = vld [vmem:[%s38 + $0x7e8] sm:$0xff]
      %547 = vst [vmem:[%s39 + $0x7e8] sm:$0xff] %v546
      %v548 = vld [vmem:[%s38 + $0x7f0] sm:$0xff]
      %549 = vst [vmem:[%s39 + $0x7f0] sm:$0xff] %v548
      %v550 = vld [vmem:[%s38 + $0x7f8] sm:$0xff]
      %551 = vst [vmem:[%s39 + $0x7f8] sm:$0xff] %v550
    $region42: #{forward.1} parent=36 // loop_footer
      %s37 = sadd.s32 1, %s33
    $region43: #{forward.1} parent=36 // loop_footer_branch
      %32 = sbr.rel target = $region39
    $region44: #{forward.1} parent=36 // loop_exit
      _
  $region37: #{forward.1} parent=0 // pred_fallthru
    _
  // Predicated region
  $region45: #{forward.1} parent=0 // pred_check
    _
  $region46: #{forward.1} parent=0 // pred_check_branch
    %553 = sbr.rel target = $region48
  $region47: #{forward.1} parent=0 // pred_region
    _
  $region48: #{forward.1} parent=0 // pred_fallthru
    _
  // Predicated region
  $region49: #{forward.1} parent=0 // pred_check
    _
  $region50: #{forward.1} parent=0 // pred_check_branch
    %556 = sbr.rel (0) target = $region52
  $region51: #{forward.1} parent=0 // pred_region
    %557 = vsyncadd [#allocation4], 32768
  $region52: #{forward.1} parent=0 // pred_fallthru
    _
  %v558 = vld [vmem:[%s1] sm:$0xff]
  %v559 = vld [vmem:[%s0] sm:$0xff]
  %v560 = vld [vmem:[%s0 + $0x8] sm:$0xff]
  %v561 = vld [vmem:[%s0 + $0x10] sm:$0xff]
  %v562 = vld [vmem:[%s0 + $0x18] sm:$0xff]
  %v563 = vld [vmem:[%s0 + $0x20] sm:$0xff]
  %v564 = vld [vmem:[%s0 + $0x28] sm:$0xff]
  %v565 = vld [vmem:[%s0 + $0x30] sm:$0xff]
  %v566 = vld [vmem:[%s0 + $0x38] sm:$0xff]
  %v567 = vld [vmem:[%s0 + $0x40] sm:$0xff]
  %v568 = vld [vmem:[%s0 + $0x48] sm:$0xff]
  %v569 = vld [vmem:[%s0 + $0x50] sm:$0xff]
  %v570 = vld [vmem:[%s0 + $0x58] sm:$0xff]
  %v571 = vld [vmem:[%s0 + $0x60] sm:$0xff]
  %v572 = vld [vmem:[%s0 + $0x68] sm:$0xff]
  %v573 = vld [vmem:[%s0 + $0x70] sm:$0xff]
  %v574 = vld [vmem:[%s0 + $0x78] sm:$0xff]
  %v575 = vld [vmem:[%s0 + $0x80] sm:$0xf]
  %v576 = vld [vmem:[%s0 + $0x88] sm:$0xf]
  %v577 = vld [vmem:[%s0 + $0x90] sm:$0xf]
  %v578 = vld [vmem:[%s0 + $0x98] sm:$0xf]
  %v579 = vld [vmem:[%s2] sm:$0xff]
  %581 = vset.pattern.permute.xlu0 0
  %582 = vperm.xlu0 %581, %v579
  %v583 = vpop.permute.xlu0 %582
  %vm585 = vcmask 293888
  %v587 = vsel %vm585, %v558, 0
  %vm589 = vcmask 1043456
  %v591 = vsel %vm589, %v575, 0
  %v594 = vsel %vm589, %v576, 0
  %v597 = vsel %vm589, %v577, 0
  %v600 = vsel %vm589, %v578, 0
  %602 = vmatpush.msra.mxu0 0.0
  %603 = vmatpush.msra.mxu0 0.0
  %604 = vmatpush.msra.mxu0 0.0
  %605 = vmatpush.msra.mxu0 0.0
  %606 = vmatpush.msra.mxu0 0.0
  %607 = vmatpush.msra.mxu0 0.0
  %608 = vmatpush.msra.mxu0 0.0
  %609 = vmatpush.msra.mxu0 0.0
  %610 = vmatpush.msra.mxu0 0.0
  %611 = vmatpush.msra.mxu0 0.0
  %612 = vmatpush.msra.mxu0 0.0
  %613 = vmatpush.msra.mxu0 %v591
  %614 = vmatpush.msra.mxu0 %v571
  %615 = vmatpush.msra.mxu0 %v567
  %616 = vmatpush.msra.mxu0 %v563
  %617 = vmatpush.msra.mxu0 %v559
  %618 = vmatmul.f32.gmra.mxu0 %v587
  %v619 = vpop.f32.mrf.mxu0
  %v620 = vadd.f32 %v583, %v619
  %621 = vdwg.mxu0
  %622 = vmatpush.msra.mxu0 0.0
  %623 = vmatpush.msra.mxu0 0.0
  %624 = vmatpush.msra.mxu0 0.0
  %625 = vmatpush.msra.mxu0 0.0
  %626 = vmatpush.msra.mxu0 0.0
  %627 = vmatpush.msra.mxu0 0.0
  %628 = vmatpush.msra.mxu0 0.0
  %629 = vmatpush.msra.mxu0 0.0
  %630 = vmatpush.msra.mxu0 0.0
  %631 = vmatpush.msra.mxu0 0.0
  %632 = vmatpush.msra.mxu0 0.0
  %633 = vmatpush.msra.mxu0 %v594
  %634 = vmatpush.msra.mxu0 %v572
  %635 = vmatpush.msra.mxu0 %v568
  %636 = vmatpush.msra.mxu0 %v564
  %637 = vmatpush.msra.mxu0 %v560
  %638 = vmatmul.f32.gmra.mxu0 %v587
  %v639 = vpop.f32.mrf.mxu0
  %v640 = vadd.f32 %v583, %v639
  %641 = vdwg.mxu0
  %642 = vmatpush.msra.mxu0 0.0
  %643 = vmatpush.msra.mxu0 0.0
  %644 = vmatpush.msra.mxu0 0.0
  %645 = vmatpush.msra.mxu0 0.0
  %646 = vmatpush.msra.mxu0 0.0
  %647 = vmatpush.msra.mxu0 0.0
  %648 = vmatpush.msra.mxu0 0.0
  %649 = vmatpush.msra.mxu0 0.0
  %650 = vmatpush.msra.mxu0 0.0
  %651 = vmatpush.msra.mxu0 0.0
  %652 = vmatpush.msra.mxu0 0.0
  %653 = vmatpush.msra.mxu0 %v597
  %654 = vmatpush.msra.mxu0 %v573
  %655 = vmatpush.msra.mxu0 %v569
  %656 = vmatpush.msra.mxu0 %v565
  %657 = vmatpush.msra.mxu0 %v561
  %658 = vmatmul.f32.gmra.mxu0 %v587
  %v659 = vpop.f32.mrf.mxu0
  %v660 = vadd.f32 %v583, %v659
  %661 = vdwg.mxu0
  %662 = vmatpush.msra.mxu0 0.0
  %663 = vmatpush.msra.mxu0 0.0
  %664 = vmatpush.msra.mxu0 0.0
  %665 = vmatpush.msra.mxu0 0.0
  %666 = vmatpush.msra.mxu0 0.0
  %667 = vmatpush.msra.mxu0 0.0
  %668 = vmatpush.msra.mxu0 0.0
  %669 = vmatpush.msra.mxu0 0.0
  %670 = vmatpush.msra.mxu0 0.0
  %671 = vmatpush.msra.mxu0 0.0
  %672 = vmatpush.msra.mxu0 0.0
  %673 = vmatpush.msra.mxu0 %v600
  %674 = vmatpush.msra.mxu0 %v574
  %675 = vmatpush.msra.mxu0 %v570
  %676 = vmatpush.msra.mxu0 %v566
  %677 = vmatpush.msra.mxu0 %v562
  %678 = vmatmul.f32.gmra.mxu0 %v587
  %v679 = vpop.f32.mrf.mxu0
  %v680 = vadd.f32 %v583, %v679
  %681 = vdwg.mxu0
  %v682 = vmax.f32 %v620, 0.0
  %v683 = vmax.f32 %v640, 0.0
  %v684 = vmax.f32 %v660, 0.0
  %v685 = vmax.f32 %v680, 0.0
  %v688 = vrot.slane %v683, 7
  %vm689 = vcmask 1040384
  %v690 = vsel %vm689, %v682, %v688
  %v692 = vlaneseq
  %vm693 = vcmp.ge.s32.totalorder %v692, 0
  %vm694 = vcmp.lt.s32.totalorder %v692, 256
  %vm695 = vmand %vm693, %vm694
  %696 = vst.msk [vmem:[#allocation2] ss:$2 sm:$0x3] %vm695, %v690
  %697 = vst [vmem:[#allocation1] sm:$0xff] %v682
  %698 = vst [vmem:[#allocation1 + $0x9] sm:$0xff] %v683
  %s699 = scalar_lea.vmem [#allocation1], 1
  %v700 = vld [vmem:[%s699] ss:$9 sm:$0xff]
  %s702 = scalar_lea.vmem [#allocation2], 4
  %703 = vst.msk [vmem:[%s702] ss:$2 sm:$0x3] %vm695, %v700
  %704 = vst [vmem:[#allocation1] sm:$0xff] %v682
  %705 = vst [vmem:[#allocation1 + $0x9] sm:$0xff] %v683
  %s706 = scalar_lea.vmem [#allocation1], 2
  %v707 = vld [vmem:[%s706] ss:$9 sm:$0xff]
  %s709 = scalar_lea.vmem [#allocation2], 8
  %710 = vst.msk [vmem:[%s709] ss:$2 sm:$0x3] %vm695, %v707
  %711 = vst [vmem:[#allocation1] sm:$0xff] %v682
  %712 = vst [vmem:[#allocation1 + $0x9] sm:$0xff] %v683
  %s713 = scalar_lea.vmem [#allocation1], 3
  %v714 = vld [vmem:[%s713] ss:$9 sm:$0xff]
  %s716 = scalar_lea.vmem [#allocation2], 12
  %717 = vst.msk [vmem:[%s716] ss:$2 sm:$0x3] %vm695, %v714
  %718 = vst [vmem:[#allocation1] sm:$0xff] %v682
  %719 = vst [vmem:[#allocation1 + $0x9] sm:$0xff] %v683
  %s720 = scalar_lea.vmem [#allocation1], 4
  %v721 = vld [vmem:[%s720] ss:$9 sm:$0xff]
  %s723 = scalar_lea.vmem [#allocation2], 16
  %724 = vst.msk [vmem:[%s723] ss:$2 sm:$0x3] %vm695, %v721
  %725 = vst [vmem:[#allocation1] sm:$0xff] %v682
  %726 = vst [vmem:[#allocation1 + $0x9] sm:$0xff] %v683
  %s727 = scalar_lea.vmem [#allocation1], 5
  %v728 = vld [vmem:[%s727] ss:$9 sm:$0xff]
  %s730 = scalar_lea.vmem [#allocation2], 20
  %731 = vst.msk [vmem:[%s730] ss:$2 sm:$0x3] %vm695, %v728
  %732 = vst [vmem:[#allocation1] sm:$0xff] %v682
  %733 = vst [vmem:[#allocation1 + $0x9] sm:$0xff] %v683
  %s734 = scalar_lea.vmem [#allocation1], 6
  %v735 = vld [vmem:[%s734] ss:$9 sm:$0xff]
  %s737 = scalar_lea.vmem [#allocation2], 24
  %738 = vst.msk [vmem:[%s737] ss:$2 sm:$0x3] %vm695, %v735
  %739 = vst [vmem:[#allocation1] sm:$0xff] %v682
  %740 = vst [vmem:[#allocation1 + $0x9] sm:$0xff] %v683
  %s741 = scalar_lea.vmem [#allocation1], 7
  %v742 = vld [vmem:[%s741] ss:$9 sm:$0xff]
  %s744 = scalar_lea.vmem [#allocation2], 28
  %745 = vst.msk [vmem:[%s744] ss:$2 sm:$0x3] %vm695, %v742
  %v748 = vrot.slane %v685, 7
  %v749 = vsel %vm689, %v684, %v748
  %s751 = scalar_lea.vmem [#allocation2], 1
  %752 = vst.msk [vmem:[%s751] ss:$2 sm:$0x3] %vm695, %v749
  %753 = vst [vmem:[#allocation1] sm:$0xff] %v684
  %754 = vst [vmem:[#allocation1 + $0x9] sm:$0xff] %v685
  %s755 = scalar_lea.vmem [#allocation1], 1
  %v756 = vld [vmem:[%s755] ss:$9 sm:$0xff]
  %s758 = scalar_lea.vmem [#allocation2], 5
  %759 = vst.msk [vmem:[%s758] ss:$2 sm:$0x3] %vm695, %v756
  %760 = vst [vmem:[#allocation1] sm:$0xff] %v684
  %761 = vst [vmem:[#allocation1 + $0x9] sm:$0xff] %v685
  %s762 = scalar_lea.vmem [#allocation1], 2
  %v763 = vld [vmem:[%s762] ss:$9 sm:$0xff]
  %s765 = scalar_lea.vmem [#allocation2], 9
  %766 = vst.msk [vmem:[%s765] ss:$2 sm:$0x3] %vm695, %v763
  %767 = vst [vmem:[#allocation1] sm:$0xff] %v684
  %768 = vst [vmem:[#allocation1 + $0x9] sm:$0xff] %v685
  %s769 = scalar_lea.vmem [#allocation1], 3
  %v770 = vld [vmem:[%s769] ss:$9 sm:$0xff]
  %s772 = scalar_lea.vmem [#allocation2], 13
  %773 = vst.msk [vmem:[%s772] ss:$2 sm:$0x3] %vm695, %v770
  %774 = vst [vmem:[#allocation1] sm:$0xff] %v684
  %775 = vst [vmem:[#allocation1 + $0x9] sm:$0xff] %v685
  %s776 = scalar_lea.vmem [#allocation1], 4
  %v777 = vld [vmem:[%s776] ss:$9 sm:$0xff]
  %s779 = scalar_lea.vmem [#allocation2], 17
  %780 = vst.msk [vmem:[%s779] ss:$2 sm:$0x3] %vm695, %v777
  %781 = vst [vmem:[#allocation1] sm:$0xff] %v684
  %782 = vst [vmem:[#allocation1 + $0x9] sm:$0xff] %v685
  %s783 = scalar_lea.vmem [#allocation1], 5
  %v784 = vld [vmem:[%s783] ss:$9 sm:$0xff]
  %s786 = scalar_lea.vmem [#allocation2], 21
  %787 = vst.msk [vmem:[%s786] ss:$2 sm:$0x3] %vm695, %v784
  %788 = vst [vmem:[#allocation1] sm:$0xff] %v684
  %789 = vst [vmem:[#allocation1 + $0x9] sm:$0xff] %v685
  %s790 = scalar_lea.vmem [#allocation1], 6
  %v791 = vld [vmem:[%s790] ss:$9 sm:$0xff]
  %s793 = scalar_lea.vmem [#allocation2], 25
  %794 = vst.msk [vmem:[%s793] ss:$2 sm:$0x3] %vm695, %v791
  %795 = vst [vmem:[#allocation1] sm:$0xff] %v684
  %796 = vst [vmem:[#allocation1 + $0x9] sm:$0xff] %v685
  %s797 = scalar_lea.vmem [#allocation1], 7
  %v798 = vld [vmem:[%s797] ss:$9 sm:$0xff]
  %s800 = scalar_lea.vmem [#allocation2], 29
  %801 = vst.msk [vmem:[%s800] ss:$2 sm:$0x3] %vm695, %v798
  %s802 = smul.u32 2048, 1
  %s803 = sshll.u32 %s802, 4
  %804 = dma.done [#allocation4], %s803
  %v805 = vld [vmem:[#allocation2] sm:$0xff]
  %v806 = vld [vmem:[#allocation2 + $0x8] sm:$0xff]
  %v807 = vld [vmem:[#allocation2 + $0x10] sm:$0xff]
  %v808 = vld [vmem:[#allocation2 + $0x18] sm:$0xff]
  %v809 = vld [vmem:[#allocation3] sm:$0xff]
  %v810 = vld [vmem:[#allocation3 + $0x8] sm:$0xff]
  %v811 = vld [vmem:[#allocation3 + $0x10] sm:$0xff]
  %v812 = vld [vmem:[#allocation3 + $0x18] sm:$0xff]
  %v813 = vld [vmem:[#allocation3 + $0x20] sm:$0xff]
  %v814 = vld [vmem:[#allocation3 + $0x28] sm:$0xff]
  %v815 = vld [vmem:[#allocation3 + $0x30] sm:$0xff]
  %v816 = vld [vmem:[#allocation3 + $0x38] sm:$0xff]
  %v817 = vld [vmem:[#allocation3 + $0x40] sm:$0xff]
  %v818 = vld [vmem:[#allocation3 + $0x48] sm:$0xff]
  %v819 = vld [vmem:[#allocation3 + $0x50] sm:$0xff]
  %v820 = vld [vmem:[#allocation3 + $0x58] sm:$0xff]
  %v821 = vld [vmem:[#allocation3 + $0x60] sm:$0xff]
  %v822 = vld [vmem:[#allocation3 + $0x68] sm:$0xff]
  %v823 = vld [vmem:[#allocation3 + $0x70] sm:$0xff]
  %v824 = vld [vmem:[#allocation3 + $0x78] sm:$0xff]
  %v825 = vld [vmem:[#allocation3 + $0x80] sm:$0xff]
  %v826 = vld [vmem:[#allocation3 + $0x88] sm:$0xff]
  %v827 = vld [vmem:[#allocation3 + $0x90] sm:$0xff]
  %v828 = vld [vmem:[#allocation3 + $0x98] sm:$0xff]
  %v829 = vld [vmem:[#allocation3 + $0xa0] sm:$0xff]
  %v830 = vld [vmem:[#allocation3 + $0xa8] sm:$0xff]
  %v831 = vld [vmem:[#allocation3 + $0xb0] sm:$0xff]
  %v832 = vld [vmem:[#allocation3 + $0xb8] sm:$0xff]
  %v833 = vld [vmem:[#allocation3 + $0xc0] sm:$0xff]
  %v834 = vld [vmem:[#allocation3 + $0xc8] sm:$0xff]
  %v835 = vld [vmem:[#allocation3 + $0xd0] sm:$0xff]
  %v836 = vld [vmem:[#allocation3 + $0xd8] sm:$0xff]
  %v837 = vld [vmem:[#allocation3 + $0xe0] sm:$0xff]
  %v838 = vld [vmem:[#allocation3 + $0xe8] sm:$0xff]
  %v839 = vld [vmem:[#allocation3 + $0xf0] sm:$0xff]
  %v840 = vld [vmem:[#allocation3 + $0xf8] sm:$0xff]
  %v841 = vld [vmem:[#allocation3 + $0x100] sm:$0xff]
  %v842 = vld [vmem:[#allocation3 + $0x108] sm:$0xff]
  %v843 = vld [vmem:[#allocation3 + $0x110] sm:$0xff]
  %v844 = vld [vmem:[#allocation3 + $0x118] sm:$0xff]
  %v845 = vld [vmem:[#allocation3 + $0x120] sm:$0xff]
  %v846 = vld [vmem:[#allocation3 + $0x128] sm:$0xff]
  %v847 = vld [vmem:[#allocation3 + $0x130] sm:$0xff]
  %v848 = vld [vmem:[#allocation3 + $0x138] sm:$0xff]
  %v849 = vld [vmem:[#allocation3 + $0x140] sm:$0xff]
  %v850 = vld [vmem:[#allocation3 + $0x148] sm:$0xff]
  %v851 = vld [vmem:[#allocation3 + $0x150] sm:$0xff]
  %v852 = vld [vmem:[#allocation3 + $0x158] sm:$0xff]
  %v853 = vld [vmem:[#allocation3 + $0x160] sm:$0xff]
  %v854 = vld [vmem:[#allocation3 + $0x168] sm:$0xff]
  %v855 = vld [vmem:[#allocation3 + $0x170] sm:$0xff]
  %v856 = vld [vmem:[#allocation3 + $0x178] sm:$0xff]
  %v857 = vld [vmem:[#allocation3 + $0x180] sm:$0xff]
  %v858 = vld [vmem:[#allocation3 + $0x188] sm:$0xff]
  %v859 = vld [vmem:[#allocation3 + $0x190] sm:$0xff]
  %v860 = vld [vmem:[#allocation3 + $0x198] sm:$0xff]
  %v861 = vld [vmem:[#allocation3 + $0x1a0] sm:$0xff]
  %v862 = vld [vmem:[#allocation3 + $0x1a8] sm:$0xff]
  %v863 = vld [vmem:[#allocation3 + $0x1b0] sm:$0xff]
  %v864 = vld [vmem:[#allocation3 + $0x1b8] sm:$0xff]
  %v865 = vld [vmem:[#allocation3 + $0x1c0] sm:$0xff]
  %v866 = vld [vmem:[#allocation3 + $0x1c8] sm:$0xff]
  %v867 = vld [vmem:[#allocation3 + $0x1d0] sm:$0xff]
  %v868 = vld [vmem:[#allocation3 + $0x1d8] sm:$0xff]
  %v869 = vld [vmem:[#allocation3 + $0x1e0] sm:$0xff]
  %v870 = vld [vmem:[#allocation3 + $0x1e8] sm:$0xff]
  %v871 = vld [vmem:[#allocation3 + $0x1f0] sm:$0xff]
  %v872 = vld [vmem:[#allocation3 + $0x1f8] sm:$0xff]
  %v873 = vld [vmem:[#allocation3 + $0x200] sm:$0xff]
  %v874 = vld [vmem:[#allocation3 + $0x208] sm:$0xff]
  %v875 = vld [vmem:[#allocation3 + $0x210] sm:$0xff]
  %v876 = vld [vmem:[#allocation3 + $0x218] sm:$0xff]
  %v877 = vld [vmem:[#allocation3 + $0x220] sm:$0xff]
  %v878 = vld [vmem:[#allocation3 + $0x228] sm:$0xff]
  %v879 = vld [vmem:[#allocation3 + $0x230] sm:$0xff]
  %v880 = vld [vmem:[#allocation3 + $0x238] sm:$0xff]
  %v881 = vld [vmem:[#allocation3 + $0x240] sm:$0xff]
  %v882 = vld [vmem:[#allocation3 + $0x248] sm:$0xff]
  %v883 = vld [vmem:[#allocation3 + $0x250] sm:$0xff]
  %v884 = vld [vmem:[#allocation3 + $0x258] sm:$0xff]
  %v885 = vld [vmem:[#allocation3 + $0x260] sm:$0xff]
  %v886 = vld [vmem:[#allocation3 + $0x268] sm:$0xff]
  %v887 = vld [vmem:[#allocation3 + $0x270] sm:$0xff]
  %v888 = vld [vmem:[#allocation3 + $0x278] sm:$0xff]
  %v889 = vld [vmem:[#allocation3 + $0x280] sm:$0xff]
  %v890 = vld [vmem:[#allocation3 + $0x288] sm:$0xff]
  %v891 = vld [vmem:[#allocation3 + $0x290] sm:$0xff]
  %v892 = vld [vmem:[#allocation3 + $0x298] sm:$0xff]
  %v893 = vld [vmem:[#allocation3 + $0x2a0] sm:$0xff]
  %v894 = vld [vmem:[#allocation3 + $0x2a8] sm:$0xff]
  %v895 = vld [vmem:[#allocation3 + $0x2b0] sm:$0xff]
  %v896 = vld [vmem:[#allocation3 + $0x2b8] sm:$0xff]
  %v897 = vld [vmem:[#allocation3 + $0x2c0] sm:$0xff]
  %v898 = vld [vmem:[#allocation3 + $0x2c8] sm:$0xff]
  %v899 = vld [vmem:[#allocation3 + $0x2d0] sm:$0xff]
  %v900 = vld [vmem:[#allocation3 + $0x2d8] sm:$0xff]
  %v901 = vld [vmem:[#allocation3 + $0x2e0] sm:$0xff]
  %v902 = vld [vmem:[#allocation3 + $0x2e8] sm:$0xff]
  %v903 = vld [vmem:[#allocation3 + $0x2f0] sm:$0xff]
  %v904 = vld [vmem:[#allocation3 + $0x2f8] sm:$0xff]
  %v905 = vld [vmem:[#allocation3 + $0x300] sm:$0xff]
  %v906 = vld [vmem:[#allocation3 + $0x308] sm:$0xff]
  %v907 = vld [vmem:[#allocation3 + $0x310] sm:$0xff]
  %v908 = vld [vmem:[#allocation3 + $0x318] sm:$0xff]
  %v909 = vld [vmem:[#allocation3 + $0x320] sm:$0xff]
  %v910 = vld [vmem:[#allocation3 + $0x328] sm:$0xff]
  %v911 = vld [vmem:[#allocation3 + $0x330] sm:$0xff]
  %v912 = vld [vmem:[#allocation3 + $0x338] sm:$0xff]
  %v913 = vld [vmem:[#allocation3 + $0x340] sm:$0xff]
  %v914 = vld [vmem:[#allocation3 + $0x348] sm:$0xff]
  %v915 = vld [vmem:[#allocation3 + $0x350] sm:$0xff]
  %v916 = vld [vmem:[#allocation3 + $0x358] sm:$0xff]
  %v917 = vld [vmem:[#allocation3 + $0x360] sm:$0xff]
  %v918 = vld [vmem:[#allocation3 + $0x368] sm:$0xff]
  %v919 = vld [vmem:[#allocation3 + $0x370] sm:$0xff]
  %v920 = vld [vmem:[#allocation3 + $0x378] sm:$0xff]
  %v921 = vld [vmem:[#allocation3 + $0x380] sm:$0xff]
  %v922 = vld [vmem:[#allocation3 + $0x388] sm:$0xff]
  %v923 = vld [vmem:[#allocation3 + $0x390] sm:$0xff]
  %v924 = vld [vmem:[#allocation3 + $0x398] sm:$0xff]
  %v925 = vld [vmem:[#allocation3 + $0x3a0] sm:$0xff]
  %v926 = vld [vmem:[#allocation3 + $0x3a8] sm:$0xff]
  %v927 = vld [vmem:[#allocation3 + $0x3b0] sm:$0xff]
  %v928 = vld [vmem:[#allocation3 + $0x3b8] sm:$0xff]
  %v929 = vld [vmem:[#allocation3 + $0x3c0] sm:$0xff]
  %v930 = vld [vmem:[#allocation3 + $0x3c8] sm:$0xff]
  %v931 = vld [vmem:[#allocation3 + $0x3d0] sm:$0xff]
  %v932 = vld [vmem:[#allocation3 + $0x3d8] sm:$0xff]
  %v933 = vld [vmem:[#allocation3 + $0x3e0] sm:$0xff]
  %v934 = vld [vmem:[#allocation3 + $0x3e8] sm:$0xff]
  %v935 = vld [vmem:[#allocation3 + $0x3f0] sm:$0xff]
  %v936 = vld [vmem:[#allocation3 + $0x3f8] sm:$0xff]
  %v937 = vld [vmem:[#allocation3 + $0x400] sm:$0xff]
  %v938 = vld [vmem:[#allocation3 + $0x408] sm:$0xff]
  %v939 = vld [vmem:[#allocation3 + $0x410] sm:$0xff]
  %v940 = vld [vmem:[#allocation3 + $0x418] sm:$0xff]
  %v941 = vld [vmem:[#allocation3 + $0x420] sm:$0xff]
  %v942 = vld [vmem:[#allocation3 + $0x428] sm:$0xff]
  %v943 = vld [vmem:[#allocation3 + $0x430] sm:$0xff]
  %v944 = vld [vmem:[#allocation3 + $0x438] sm:$0xff]
  %v945 = vld [vmem:[#allocation3 + $0x440] sm:$0xff]
  %v946 = vld [vmem:[#allocation3 + $0x448] sm:$0xff]
  %v947 = vld [vmem:[#allocation3 + $0x450] sm:$0xff]
  %v948 = vld [vmem:[#allocation3 + $0x458] sm:$0xff]
  %v949 = vld [vmem:[#allocation3 + $0x460] sm:$0xff]
  %v950 = vld [vmem:[#allocation3 + $0x468] sm:$0xff]
  %v951 = vld [vmem:[#allocation3 + $0x470] sm:$0xff]
  %v952 = vld [vmem:[#allocation3 + $0x478] sm:$0xff]
  %v953 = vld [vmem:[#allocation3 + $0x480] sm:$0xff]
  %v954 = vld [vmem:[#allocation3 + $0x488] sm:$0xff]
  %v955 = vld [vmem:[#allocation3 + $0x490] sm:$0xff]
  %v956 = vld [vmem:[#allocation3 + $0x498] sm:$0xff]
  %v957 = vld [vmem:[#allocation3 + $0x4a0] sm:$0xff]
  %v958 = vld [vmem:[#allocation3 + $0x4a8] sm:$0xff]
  %v959 = vld [vmem:[#allocation3 + $0x4b0] sm:$0xff]
  %v960 = vld [vmem:[#allocation3 + $0x4b8] sm:$0xff]
  %v961 = vld [vmem:[#allocation3 + $0x4c0] sm:$0xff]
  %v962 = vld [vmem:[#allocation3 + $0x4c8] sm:$0xff]
  %v963 = vld [vmem:[#allocation3 + $0x4d0] sm:$0xff]
  %v964 = vld [vmem:[#allocation3 + $0x4d8] sm:$0xff]
  %v965 = vld [vmem:[#allocation3 + $0x4e0] sm:$0xff]
  %v966 = vld [vmem:[#allocation3 + $0x4e8] sm:$0xff]
  %v967 = vld [vmem:[#allocation3 + $0x4f0] sm:$0xff]
  %v968 = vld [vmem:[#allocation3 + $0x4f8] sm:$0xff]
  %v969 = vld [vmem:[#allocation3 + $0x500] sm:$0xff]
  %v970 = vld [vmem:[#allocation3 + $0x508] sm:$0xff]
  %v971 = vld [vmem:[#allocation3 + $0x510] sm:$0xff]
  %v972 = vld [vmem:[#allocation3 + $0x518] sm:$0xff]
  %v973 = vld [vmem:[#allocation3 + $0x520] sm:$0xff]
  %v974 = vld [vmem:[#allocation3 + $0x528] sm:$0xff]
  %v975 = vld [vmem:[#allocation3 + $0x530] sm:$0xff]
  %v976 = vld [vmem:[#allocation3 + $0x538] sm:$0xff]
  %v977 = vld [vmem:[#allocation3 + $0x540] sm:$0xff]
  %v978 = vld [vmem:[#allocation3 + $0x548] sm:$0xff]
  %v979 = vld [vmem:[#allocation3 + $0x550] sm:$0xff]
  %v980 = vld [vmem:[#allocation3 + $0x558] sm:$0xff]
  %v981 = vld [vmem:[#allocation3 + $0x560] sm:$0xff]
  %v982 = vld [vmem:[#allocation3 + $0x568] sm:$0xff]
  %v983 = vld [vmem:[#allocation3 + $0x570] sm:$0xff]
  %v984 = vld [vmem:[#allocation3 + $0x578] sm:$0xff]
  %v985 = vld [vmem:[#allocation3 + $0x580] sm:$0xff]
  %v986 = vld [vmem:[#allocation3 + $0x588] sm:$0xff]
  %v987 = vld [vmem:[#allocation3 + $0x590] sm:$0xff]
  %v988 = vld [vmem:[#allocation3 + $0x598] sm:$0xff]
  %v989 = vld [vmem:[#allocation3 + $0x5a0] sm:$0xff]
  %v990 = vld [vmem:[#allocation3 + $0x5a8] sm:$0xff]
  %v991 = vld [vmem:[#allocation3 + $0x5b0] sm:$0xff]
  %v992 = vld [vmem:[#allocation3 + $0x5b8] sm:$0xff]
  %v993 = vld [vmem:[#allocation3 + $0x5c0] sm:$0xff]
  %v994 = vld [vmem:[#allocation3 + $0x5c8] sm:$0xff]
  %v995 = vld [vmem:[#allocation3 + $0x5d0] sm:$0xff]
  %v996 = vld [vmem:[#allocation3 + $0x5d8] sm:$0xff]
  %v997 = vld [vmem:[#allocation3 + $0x5e0] sm:$0xff]
  %v998 = vld [vmem:[#allocation3 + $0x5e8] sm:$0xff]
  %v999 = vld [vmem:[#allocation3 + $0x5f0] sm:$0xff]
  %v1000 = vld [vmem:[#allocation3 + $0x5f8] sm:$0xff]
  %v1001 = vld [vmem:[#allocation3 + $0x600] sm:$0xff]
  %v1002 = vld [vmem:[#allocation3 + $0x608] sm:$0xff]
  %v1003 = vld [vmem:[#allocation3 + $0x610] sm:$0xff]
  %v1004 = vld [vmem:[#allocation3 + $0x618] sm:$0xff]
  %v1005 = vld [vmem:[#allocation3 + $0x620] sm:$0xff]
  %v1006 = vld [vmem:[#allocation3 + $0x628] sm:$0xff]
  %v1007 = vld [vmem:[#allocation3 + $0x630] sm:$0xff]
  %v1008 = vld [vmem:[#allocation3 + $0x638] sm:$0xff]
  %v1009 = vld [vmem:[#allocation3 + $0x640] sm:$0xff]
  %v1010 = vld [vmem:[#allocation3 + $0x648] sm:$0xff]
  %v1011 = vld [vmem:[#allocation3 + $0x650] sm:$0xff]
  %v1012 = vld [vmem:[#allocation3 + $0x658] sm:$0xff]
  %v1013 = vld [vmem:[#allocation3 + $0x660] sm:$0xff]
  %v1014 = vld [vmem:[#allocation3 + $0x668] sm:$0xff]
  %v1015 = vld [vmem:[#allocation3 + $0x670] sm:$0xff]
  %v1016 = vld [vmem:[#allocation3 + $0x678] sm:$0xff]
  %v1017 = vld [vmem:[#allocation3 + $0x680] sm:$0xff]
  %v1018 = vld [vmem:[#allocation3 + $0x688] sm:$0xff]
  %v1019 = vld [vmem:[#allocation3 + $0x690] sm:$0xff]
  %v1020 = vld [vmem:[#allocation3 + $0x698] sm:$0xff]
  %v1021 = vld [vmem:[#allocation3 + $0x6a0] sm:$0xff]
  %v1022 = vld [vmem:[#allocation3 + $0x6a8] sm:$0xff]
  %v1023 = vld [vmem:[#allocation3 + $0x6b0] sm:$0xff]
  %v1024 = vld [vmem:[#allocation3 + $0x6b8] sm:$0xff]
  %v1025 = vld [vmem:[#allocation3 + $0x6c0] sm:$0xff]
  %v1026 = vld [vmem:[#allocation3 + $0x6c8] sm:$0xff]
  %v1027 = vld [vmem:[#allocation3 + $0x6d0] sm:$0xff]
  %v1028 = vld [vmem:[#allocation3 + $0x6d8] sm:$0xff]
  %v1029 = vld [vmem:[#allocation3 + $0x6e0] sm:$0xff]
  %v1030 = vld [vmem:[#allocation3 + $0x6e8] sm:$0xff]
  %v1031 = vld [vmem:[#allocation3 + $0x6f0] sm:$0xff]
  %v1032 = vld [vmem:[#allocation3 + $0x6f8] sm:$0xff]
  %v1033 = vld [vmem:[#allocation3 + $0x700] sm:$0xff]
  %v1034 = vld [vmem:[#allocation3 + $0x708] sm:$0xff]
  %v1035 = vld [vmem:[#allocation3 + $0x710] sm:$0xff]
  %v1036 = vld [vmem:[#allocation3 + $0x718] sm:$0xff]
  %v1037 = vld [vmem:[#allocation3 + $0x720] sm:$0xff]
  %v1038 = vld [vmem:[#allocation3 + $0x728] sm:$0xff]
  %v1039 = vld [vmem:[#allocation3 + $0x730] sm:$0xff]
  %v1040 = vld [vmem:[#allocation3 + $0x738] sm:$0xff]
  %v1041 = vld [vmem:[#allocation3 + $0x740] sm:$0xff]
  %v1042 = vld [vmem:[#allocation3 + $0x748] sm:$0xff]
  %v1043 = vld [vmem:[#allocation3 + $0x750] sm:$0xff]
  %v1044 = vld [vmem:[#allocation3 + $0x758] sm:$0xff]
  %v1045 = vld [vmem:[#allocation3 + $0x760] sm:$0xff]
  %v1046 = vld [vmem:[#allocation3 + $0x768] sm:$0xff]
  %v1047 = vld [vmem:[#allocation3 + $0x770] sm:$0xff]
  %v1048 = vld [vmem:[#allocation3 + $0x778] sm:$0xff]
  %v1049 = vld [vmem:[#allocation3 + $0x780] sm:$0xff]
  %v1050 = vld [vmem:[#allocation3 + $0x788] sm:$0xff]
  %v1051 = vld [vmem:[#allocation3 + $0x790] sm:$0xff]
  %v1052 = vld [vmem:[#allocation3 + $0x798] sm:$0xff]
  %v1053 = vld [vmem:[#allocation3 + $0x7a0] sm:$0xff]
  %v1054 = vld [vmem:[#allocation3 + $0x7a8] sm:$0xff]
  %v1055 = vld [vmem:[#allocation3 + $0x7b0] sm:$0xff]
  %v1056 = vld [vmem:[#allocation3 + $0x7b8] sm:$0xff]
  %v1057 = vld [vmem:[#allocation3 + $0x7c0] sm:$0xff]
  %v1058 = vld [vmem:[#allocation3 + $0x7c8] sm:$0xff]
  %v1059 = vld [vmem:[#allocation3 + $0x7d0] sm:$0xff]
  %v1060 = vld [vmem:[#allocation3 + $0x7d8] sm:$0xff]
  %v1061 = vld [vmem:[#allocation3 + $0x7e0] sm:$0xff]
  %v1062 = vld [vmem:[#allocation3 + $0x7e8] sm:$0xff]
  %v1063 = vld [vmem:[#allocation3 + $0x7f0] sm:$0xff]
  %v1064 = vld [vmem:[#allocation3 + $0x7f8] sm:$0xff]
  %v1065 = vld [vmem:[%s4] sm:$0x1]
  %v1067 = vperm.slane %v1065, 0
  %1073 = vst [vmem:[#allocation1] ss:$4 sm:$0xff] %v805
  %s1074 = scalar_lea.vmem [#allocation1], 32
  %1075 = vst [vmem:[%s1074] ss:$4 sm:$0xff] %v806
  %v1076 = vld.sshfl [vmem:[#allocation1] sm:$0xff pattern:$0x73625140]
  %v1077 = vld.sshfl [vmem:[#allocation1 + $0x8] sm:$0xff pattern:$0x73625140]
  %v1078 = vld.sshfl [vmem:[#allocation1 + $0x10] sm:$0xff pattern:$0x73625140]
  %v1079 = vld.sshfl [vmem:[#allocation1 + $0x18] sm:$0xff pattern:$0x73625140]
  %v1080 = vld.sshfl [vmem:[#allocation1 + $0x20] sm:$0xff pattern:$0x73625140]
  %v1081 = vld.sshfl [vmem:[#allocation1 + $0x28] sm:$0xff pattern:$0x73625140]
  %v1082 = vld.sshfl [vmem:[#allocation1 + $0x30] sm:$0xff pattern:$0x73625140]
  %v1083 = vld.sshfl [vmem:[#allocation1 + $0x38] sm:$0xff pattern:$0x73625140]
  %1084 = vst [vmem:[#allocation1] ss:$4 sm:$0xff] %v807
  %1085 = vst [vmem:[%s1074] ss:$4 sm:$0xff] %v808
  %v1086 = vld.sshfl [vmem:[#allocation1] sm:$0xff pattern:$0x73625140]
  %v1087 = vld.sshfl [vmem:[#allocation1 + $0x8] sm:$0xff pattern:$0x73625140]
  %v1088 = vld.sshfl [vmem:[#allocation1 + $0x10] sm:$0xff pattern:$0x73625140]
  %v1089 = vld.sshfl [vmem:[#allocation1 + $0x18] sm:$0xff pattern:$0x73625140]
  %v1090 = vld.sshfl [vmem:[#allocation1 + $0x20] sm:$0xff pattern:$0x73625140]
  %v1091 = vld.sshfl [vmem:[#allocation1 + $0x28] sm:$0xff pattern:$0x73625140]
  %v1092 = vld.sshfl [vmem:[#allocation1 + $0x30] sm:$0xff pattern:$0x73625140]
  %v1093 = vld.sshfl [vmem:[#allocation1 + $0x38] sm:$0xff pattern:$0x73625140]
  %1110 = vmatpush.msra.mxu0 %v824
  %1111 = vmatpush.msra.mxu0 %v823
  %1112 = vmatpush.msra.mxu0 %v822
  %1113 = vmatpush.msra.mxu0 %v821
  %1114 = vmatpush.msra.mxu0 %v820
  %1115 = vmatpush.msra.mxu0 %v819
  %1116 = vmatpush.msra.mxu0 %v818
  %1117 = vmatpush.msra.mxu0 %v817
  %1118 = vmatpush.msra.mxu0 %v816
  %1119 = vmatpush.msra.mxu0 %v815
  %1120 = vmatpush.msra.mxu0 %v814
  %1121 = vmatpush.msra.mxu0 %v813
  %1122 = vmatpush.msra.mxu0 %v812
  %1123 = vmatpush.msra.mxu0 %v811
  %1124 = vmatpush.msra.mxu0 %v810
  %1125 = vmatpush.msra.mxu0 %v809
  %1126 = vmatmul.f32.gmra.mxu0 %v1076
  %v1127 = vpop.f32.mrf.mxu0
  %v1128 = vadd.f32 %v1067, %v1127
  %1129 = vdwg.mxu0
  %1130 = vmatpush.msra.mxu0 %v840
  %1131 = vmatpush.msra.mxu0 %v839
  %1132 = vmatpush.msra.mxu0 %v838
  %1133 = vmatpush.msra.mxu0 %v837
  %1134 = vmatpush.msra.mxu0 %v836
  %1135 = vmatpush.msra.mxu0 %v835
  %1136 = vmatpush.msra.mxu0 %v834
  %1137 = vmatpush.msra.mxu0 %v833
  %1138 = vmatpush.msra.mxu0 %v832
  %1139 = vmatpush.msra.mxu0 %v831
  %1140 = vmatpush.msra.mxu0 %v830
  %1141 = vmatpush.msra.mxu0 %v829
  %1142 = vmatpush.msra.mxu0 %v828
  %1143 = vmatpush.msra.mxu0 %v827
  %1144 = vmatpush.msra.mxu0 %v826
  %1145 = vmatpush.msra.mxu0 %v825
  %1146 = vmatmul.f32.gmra.mxu0 %v1077
  %v1147 = vpop.f32.mrf.mxu0
  %v1148 = vadd.f32 %v1128, %v1147
  %1149 = vdwg.mxu0
  %1150 = vmatpush.msra.mxu0 %v856
  %1151 = vmatpush.msra.mxu0 %v855
  %1152 = vmatpush.msra.mxu0 %v854
  %1153 = vmatpush.msra.mxu0 %v853
  %1154 = vmatpush.msra.mxu0 %v852
  %1155 = vmatpush.msra.mxu0 %v851
  %1156 = vmatpush.msra.mxu0 %v850
  %1157 = vmatpush.msra.mxu0 %v849
  %1158 = vmatpush.msra.mxu0 %v848
  %1159 = vmatpush.msra.mxu0 %v847
  %1160 = vmatpush.msra.mxu0 %v846
  %1161 = vmatpush.msra.mxu0 %v845
  %1162 = vmatpush.msra.mxu0 %v844
  %1163 = vmatpush.msra.mxu0 %v843
  %1164 = vmatpush.msra.mxu0 %v842
  %1165 = vmatpush.msra.mxu0 %v841
  %1166 = vmatmul.f32.gmra.mxu0 %v1078
  %v1167 = vpop.f32.mrf.mxu0
  %v1168 = vadd.f32 %v1148, %v1167
  %1169 = vdwg.mxu0
  %1170 = vmatpush.msra.mxu0 %v872
  %1171 = vmatpush.msra.mxu0 %v871
  %1172 = vmatpush.msra.mxu0 %v870
  %1173 = vmatpush.msra.mxu0 %v869
  %1174 = vmatpush.msra.mxu0 %v868
  %1175 = vmatpush.msra.mxu0 %v867
  %1176 = vmatpush.msra.mxu0 %v866
  %1177 = vmatpush.msra.mxu0 %v865
  %1178 = vmatpush.msra.mxu0 %v864
  %1179 = vmatpush.msra.mxu0 %v863
  %1180 = vmatpush.msra.mxu0 %v862
  %1181 = vmatpush.msra.mxu0 %v861
  %1182 = vmatpush.msra.mxu0 %v860
  %1183 = vmatpush.msra.mxu0 %v859
  %1184 = vmatpush.msra.mxu0 %v858
  %1185 = vmatpush.msra.mxu0 %v857
  %1186 = vmatmul.f32.gmra.mxu0 %v1079
  %v1187 = vpop.f32.mrf.mxu0
  %v1188 = vadd.f32 %v1168, %v1187
  %1189 = vdwg.mxu0
  %1190 = vmatpush.msra.mxu0 %v888
  %1191 = vmatpush.msra.mxu0 %v887
  %1192 = vmatpush.msra.mxu0 %v886
  %1193 = vmatpush.msra.mxu0 %v885
  %1194 = vmatpush.msra.mxu0 %v884
  %1195 = vmatpush.msra.mxu0 %v883
  %1196 = vmatpush.msra.mxu0 %v882
  %1197 = vmatpush.msra.mxu0 %v881
  %1198 = vmatpush.msra.mxu0 %v880
  %1199 = vmatpush.msra.mxu0 %v879
  %1200 = vmatpush.msra.mxu0 %v878
  %1201 = vmatpush.msra.mxu0 %v877
  %1202 = vmatpush.msra.mxu0 %v876
  %1203 = vmatpush.msra.mxu0 %v875
  %1204 = vmatpush.msra.mxu0 %v874
  %1205 = vmatpush.msra.mxu0 %v873
  %1206 = vmatmul.f32.gmra.mxu0 %v1080
  %v1207 = vpop.f32.mrf.mxu0
  %v1208 = vadd.f32 %v1188, %v1207
  %1209 = vdwg.mxu0
  %1210 = vmatpush.msra.mxu0 %v904
  %1211 = vmatpush.msra.mxu0 %v903
  %1212 = vmatpush.msra.mxu0 %v902
  %1213 = vmatpush.msra.mxu0 %v901
  %1214 = vmatpush.msra.mxu0 %v900
  %1215 = vmatpush.msra.mxu0 %v899
  %1216 = vmatpush.msra.mxu0 %v898
  %1217 = vmatpush.msra.mxu0 %v897
  %1218 = vmatpush.msra.mxu0 %v896
  %1219 = vmatpush.msra.mxu0 %v895
  %1220 = vmatpush.msra.mxu0 %v894
  %1221 = vmatpush.msra.mxu0 %v893
  %1222 = vmatpush.msra.mxu0 %v892
  %1223 = vmatpush.msra.mxu0 %v891
  %1224 = vmatpush.msra.mxu0 %v890
  %1225 = vmatpush.msra.mxu0 %v889
  %1226 = vmatmul.f32.gmra.mxu0 %v1081
  %v1227 = vpop.f32.mrf.mxu0
  %v1228 = vadd.f32 %v1208, %v1227
  %1229 = vdwg.mxu0
  %1230 = vmatpush.msra.mxu0 %v920
  %1231 = vmatpush.msra.mxu0 %v919
  %1232 = vmatpush.msra.mxu0 %v918
  %1233 = vmatpush.msra.mxu0 %v917
  %1234 = vmatpush.msra.mxu0 %v916
  %1235 = vmatpush.msra.mxu0 %v915
  %1236 = vmatpush.msra.mxu0 %v914
  %1237 = vmatpush.msra.mxu0 %v913
  %1238 = vmatpush.msra.mxu0 %v912
  %1239 = vmatpush.msra.mxu0 %v911
  %1240 = vmatpush.msra.mxu0 %v910
  %1241 = vmatpush.msra.mxu0 %v909
  %1242 = vmatpush.msra.mxu0 %v908
  %1243 = vmatpush.msra.mxu0 %v907
  %1244 = vmatpush.msra.mxu0 %v906
  %1245 = vmatpush.msra.mxu0 %v905
  %1246 = vmatmul.f32.gmra.mxu0 %v1082
  %v1247 = vpop.f32.mrf.mxu0
  %v1248 = vadd.f32 %v1228, %v1247
  %1249 = vdwg.mxu0
  %1250 = vmatpush.msra.mxu0 %v936
  %1251 = vmatpush.msra.mxu0 %v935
  %1252 = vmatpush.msra.mxu0 %v934
  %1253 = vmatpush.msra.mxu0 %v933
  %1254 = vmatpush.msra.mxu0 %v932
  %1255 = vmatpush.msra.mxu0 %v931
  %1256 = vmatpush.msra.mxu0 %v930
  %1257 = vmatpush.msra.mxu0 %v929
  %1258 = vmatpush.msra.mxu0 %v928
  %1259 = vmatpush.msra.mxu0 %v927
  %1260 = vmatpush.msra.mxu0 %v926
  %1261 = vmatpush.msra.mxu0 %v925
  %1262 = vmatpush.msra.mxu0 %v924
  %1263 = vmatpush.msra.mxu0 %v923
  %1264 = vmatpush.msra.mxu0 %v922
  %1265 = vmatpush.msra.mxu0 %v921
  %1266 = vmatmul.f32.gmra.mxu0 %v1083
  %v1267 = vpop.f32.mrf.mxu0
  %v1268 = vadd.f32 %v1248, %v1267
  %1269 = vdwg.mxu0
  %1270 = vmatpush.msra.mxu0 %v952
  %1271 = vmatpush.msra.mxu0 %v951
  %1272 = vmatpush.msra.mxu0 %v950
  %1273 = vmatpush.msra.mxu0 %v949
  %1274 = vmatpush.msra.mxu0 %v948
  %1275 = vmatpush.msra.mxu0 %v947
  %1276 = vmatpush.msra.mxu0 %v946
  %1277 = vmatpush.msra.mxu0 %v945
  %1278 = vmatpush.msra.mxu0 %v944
  %1279 = vmatpush.msra.mxu0 %v943
  %1280 = vmatpush.msra.mxu0 %v942
  %1281 = vmatpush.msra.mxu0 %v941
  %1282 = vmatpush.msra.mxu0 %v940
  %1283 = vmatpush.msra.mxu0 %v939
  %1284 = vmatpush.msra.mxu0 %v938
  %1285 = vmatpush.msra.mxu0 %v937
  %1286 = vmatmul.f32.gmra.mxu0 %v1086
  %v1287 = vpop.f32.mrf.mxu0
  %v1288 = vadd.f32 %v1268, %v1287
  %1289 = vdwg.mxu0
  %1290 = vmatpush.msra.mxu0 %v968
  %1291 = vmatpush.msra.mxu0 %v967
  %1292 = vmatpush.msra.mxu0 %v966
  %1293 = vmatpush.msra.mxu0 %v965
  %1294 = vmatpush.msra.mxu0 %v964
  %1295 = vmatpush.msra.mxu0 %v963
  %1296 = vmatpush.msra.mxu0 %v962
  %1297 = vmatpush.msra.mxu0 %v961
  %1298 = vmatpush.msra.mxu0 %v960
  %1299 = vmatpush.msra.mxu0 %v959
  %1300 = vmatpush.msra.mxu0 %v958
  %1301 = vmatpush.msra.mxu0 %v957
  %1302 = vmatpush.msra.mxu0 %v956
  %1303 = vmatpush.msra.mxu0 %v955
  %1304 = vmatpush.msra.mxu0 %v954
  %1305 = vmatpush.msra.mxu0 %v953
  %1306 = vmatmul.f32.gmra.mxu0 %v1087
  %v1307 = vpop.f32.mrf.mxu0
  %v1308 = vadd.f32 %v1288, %v1307
  %1309 = vdwg.mxu0
  %1310 = vmatpush.msra.mxu0 %v984
  %1311 = vmatpush.msra.mxu0 %v983
  %1312 = vmatpush.msra.mxu0 %v982
  %1313 = vmatpush.msra.mxu0 %v981
  %1314 = vmatpush.msra.mxu0 %v980
  %1315 = vmatpush.msra.mxu0 %v979
  %1316 = vmatpush.msra.mxu0 %v978
  %1317 = vmatpush.msra.mxu0 %v977
  %1318 = vmatpush.msra.mxu0 %v976
  %1319 = vmatpush.msra.mxu0 %v975
  %1320 = vmatpush.msra.mxu0 %v974
  %1321 = vmatpush.msra.mxu0 %v973
  %1322 = vmatpush.msra.mxu0 %v972
  %1323 = vmatpush.msra.mxu0 %v971
  %1324 = vmatpush.msra.mxu0 %v970
  %1325 = vmatpush.msra.mxu0 %v969
  %1326 = vmatmul.f32.gmra.mxu0 %v1088
  %v1327 = vpop.f32.mrf.mxu0
  %v1328 = vadd.f32 %v1308, %v1327
  %1329 = vdwg.mxu0
  %1330 = vmatpush.msra.mxu0 %v1000
  %1331 = vmatpush.msra.mxu0 %v999
  %1332 = vmatpush.msra.mxu0 %v998
  %1333 = vmatpush.msra.mxu0 %v997
  %1334 = vmatpush.msra.mxu0 %v996
  %1335 = vmatpush.msra.mxu0 %v995
  %1336 = vmatpush.msra.mxu0 %v994
  %1337 = vmatpush.msra.mxu0 %v993
  %1338 = vmatpush.msra.mxu0 %v992
  %1339 = vmatpush.msra.mxu0 %v991
  %1340 = vmatpush.msra.mxu0 %v990
  %1341 = vmatpush.msra.mxu0 %v989
  %1342 = vmatpush.msra.mxu0 %v988
  %1343 = vmatpush.msra.mxu0 %v987
  %1344 = vmatpush.msra.mxu0 %v986
  %1345 = vmatpush.msra.mxu0 %v985
  %1346 = vmatmul.f32.gmra.mxu0 %v1089
  %v1347 = vpop.f32.mrf.mxu0
  %v1348 = vadd.f32 %v1328, %v1347
  %1349 = vdwg.mxu0
  %1350 = vmatpush.msra.mxu0 %v1016
  %1351 = vmatpush.msra.mxu0 %v1015
  %1352 = vmatpush.msra.mxu0 %v1014
  %1353 = vmatpush.msra.mxu0 %v1013
  %1354 = vmatpush.msra.mxu0 %v1012
  %1355 = vmatpush.msra.mxu0 %v1011
  %1356 = vmatpush.msra.mxu0 %v1010
  %1357 = vmatpush.msra.mxu0 %v1009
  %1358 = vmatpush.msra.mxu0 %v1008
  %1359 = vmatpush.msra.mxu0 %v1007
  %1360 = vmatpush.msra.mxu0 %v1006
  %1361 = vmatpush.msra.mxu0 %v1005
  %1362 = vmatpush.msra.mxu0 %v1004
  %1363 = vmatpush.msra.mxu0 %v1003
  %1364 = vmatpush.msra.mxu0 %v1002
  %1365 = vmatpush.msra.mxu0 %v1001
  %1366 = vmatmul.f32.gmra.mxu0 %v1090
  %v1367 = vpop.f32.mrf.mxu0
  %v1368 = vadd.f32 %v1348, %v1367
  %1369 = vdwg.mxu0
  %1370 = vmatpush.msra.mxu0 %v1032
  %1371 = vmatpush.msra.mxu0 %v1031
  %1372 = vmatpush.msra.mxu0 %v1030
  %1373 = vmatpush.msra.mxu0 %v1029
  %1374 = vmatpush.msra.mxu0 %v1028
  %1375 = vmatpush.msra.mxu0 %v1027
  %1376 = vmatpush.msra.mxu0 %v1026
  %1377 = vmatpush.msra.mxu0 %v1025
  %1378 = vmatpush.msra.mxu0 %v1024
  %1379 = vmatpush.msra.mxu0 %v1023
  %1380 = vmatpush.msra.mxu0 %v1022
  %1381 = vmatpush.msra.mxu0 %v1021
  %1382 = vmatpush.msra.mxu0 %v1020
  %1383 = vmatpush.msra.mxu0 %v1019
  %1384 = vmatpush.msra.mxu0 %v1018
  %1385 = vmatpush.msra.mxu0 %v1017
  %1386 = vmatmul.f32.gmra.mxu0 %v1091
  %v1387 = vpop.f32.mrf.mxu0
  %v1388 = vadd.f32 %v1368, %v1387
  %1389 = vdwg.mxu0
  %1390 = vmatpush.msra.mxu0 %v1048
  %1391 = vmatpush.msra.mxu0 %v1047
  %1392 = vmatpush.msra.mxu0 %v1046
  %1393 = vmatpush.msra.mxu0 %v1045
  %1394 = vmatpush.msra.mxu0 %v1044
  %1395 = vmatpush.msra.mxu0 %v1043
  %1396 = vmatpush.msra.mxu0 %v1042
  %1397 = vmatpush.msra.mxu0 %v1041
  %1398 = vmatpush.msra.mxu0 %v1040
  %1399 = vmatpush.msra.mxu0 %v1039
  %1400 = vmatpush.msra.mxu0 %v1038
  %1401 = vmatpush.msra.mxu0 %v1037
  %1402 = vmatpush.msra.mxu0 %v1036
  %1403 = vmatpush.msra.mxu0 %v1035
  %1404 = vmatpush.msra.mxu0 %v1034
  %1405 = vmatpush.msra.mxu0 %v1033
  %1406 = vmatmul.f32.gmra.mxu0 %v1092
  %v1407 = vpop.f32.mrf.mxu0
  %v1408 = vadd.f32 %v1388, %v1407
  %1409 = vdwg.mxu0
  %1410 = vmatpush.msra.mxu0 %v1064
  %1411 = vmatpush.msra.mxu0 %v1063
  %1412 = vmatpush.msra.mxu0 %v1062
  %1413 = vmatpush.msra.mxu0 %v1061
  %1414 = vmatpush.msra.mxu0 %v1060
  %1415 = vmatpush.msra.mxu0 %v1059
  %1416 = vmatpush.msra.mxu0 %v1058
  %1417 = vmatpush.msra.mxu0 %v1057
  %1418 = vmatpush.msra.mxu0 %v1056
  %1419 = vmatpush.msra.mxu0 %v1055
  %1420 = vmatpush.msra.mxu0 %v1054
  %1421 = vmatpush.msra.mxu0 %v1053
  %1422 = vmatpush.msra.mxu0 %v1052
  %1423 = vmatpush.msra.mxu0 %v1051
  %1424 = vmatpush.msra.mxu0 %v1050
  %1425 = vmatpush.msra.mxu0 %v1049
  %1426 = vmatmul.f32.gmra.mxu0 %v1093
  %v1427 = vpop.f32.mrf.mxu0
  %v1428 = vadd.f32 %v1408, %v1427
  %1429 = vdwg.mxu0
  %v1430 = vmax.f32 %v1428, 0.0
  %v1431 = vld [vmem:[%s5] sm:$0xff]
  %v1432 = vld [vmem:[%s5 + $0x8] sm:$0xff]
  %v1433 = vld [vmem:[%s5 + $0x10] sm:$0xff]
  %v1434 = vld [vmem:[%s5 + $0x18] sm:$0xff]
  %v1435 = vld [vmem:[%s6] sm:$0x1]
  %v1437 = vperm.slane %v1435, 0
  %vm1439 = vcmask 261120
  %v1441 = vsel %vm1439, %v1430, 0
  %1443 = vmatpush.msra.mxu0 0.0
  %1444 = vmatpush.msra.mxu0 0.0
  %1445 = vmatpush.msra.mxu0 0.0
  %1446 = vmatpush.msra.mxu0 0.0
  %1447 = vmatpush.msra.mxu0 0.0
  %1448 = vmatpush.msra.mxu0 0.0
  %1449 = vmatpush.msra.mxu0 0.0
  %1450 = vmatpush.msra.mxu0 0.0
  %1451 = vmatpush.msra.mxu0 0.0
  %1452 = vmatpush.msra.mxu0 0.0
  %1453 = vmatpush.msra.mxu0 0.0
  %1454 = vmatpush.msra.mxu0 0.0
  %1455 = vmatpush.msra.mxu0 %v1434
  %1456 = vmatpush.msra.mxu0 %v1433
  %1457 = vmatpush.msra.mxu0 %v1432
  %1458 = vmatpush.msra.mxu0 %v1431
  %1459 = vmatmul.f32.gmra.mxu0 %v1441
  %v1460 = vpop.f32.mrf.mxu0
  %v1461 = vadd.f32 %v1437, %v1460
  %1462 = vdwg.mxu0
  %v1463 = vmax.f32 %v1461, 0.0
  %v1464 = vld [vmem:[%s7] sm:$0xff]
  %v1465 = vld [vmem:[%s7 + $0x8] sm:$0xff]
  %v1466 = vld [vmem:[%s7 + $0x10] sm:$0xff]
  %v1467 = vld [vmem:[%s7 + $0x18] sm:$0xff]
  %v1468 = vld [vmem:[%s8] sm:$0x1]
  %v1470 = vperm.slane %v1468, 0
  %v1473 = vsel %vm1439, %v1463, 0
  %1475 = vmatpush.msra.mxu0 0.0
  %1476 = vmatpush.msra.mxu0 0.0
  %1477 = vmatpush.msra.mxu0 0.0
  %1478 = vmatpush.msra.mxu0 0.0
  %1479 = vmatpush.msra.mxu0 0.0
  %1480 = vmatpush.msra.mxu0 0.0
  %1481 = vmatpush.msra.mxu0 0.0
  %1482 = vmatpush.msra.mxu0 0.0
  %1483 = vmatpush.msra.mxu0 0.0
  %1484 = vmatpush.msra.mxu0 0.0
  %1485 = vmatpush.msra.mxu0 0.0
  %1486 = vmatpush.msra.mxu0 0.0
  %1487 = vmatpush.msra.mxu0 %v1467
  %1488 = vmatpush.msra.mxu0 %v1466
  %1489 = vmatpush.msra.mxu0 %v1465
  %1490 = vmatpush.msra.mxu0 %v1464
  %1491 = vmatmul.f32.gmra.mxu0 %v1473
  %v1492 = vpop.f32.mrf.mxu0
  %v1493 = vadd.f32 %v1470, %v1492
  %1494 = vdwg.mxu0
  %1495 = vst [vmem:[%s9] sm:$0x3] %v1493
  // Predicated region
  $region53: #{forward.1} parent=0 // pred_check
    _
  $region54: #{forward.1} parent=0 // pred_check_branch
    %1497 = sbr.rel (0) target = $region56
  $region55: #{forward.1} parent=0 // pred_region
    _
  $region56: #{forward.1} parent=0 // pred_fallthru
    _
  // Predicated region
  $region57: #{forward.1} parent=0 // pred_check
    _
  $region58: #{forward.1} parent=0 // pred_check_branch
    %1499 = sbr.rel (0) target = $region60
  $region59: #{forward.1} parent=0 // pred_region
    _
  $region60: #{forward.1} parent=0 // pred_fallthru
    _
  %1500 = vsyncmov [#allocation4]
  %s1501 = vpop.sfrf %1500
  %p1502 = scmp.eq.s32.totalorder %s1501, 0
  %p1503 = pneg %p1502
  %1505 = shalt.err (%p1503)

</llo_original>
